<compile_context>
chip_gen: v5e
topology: v5e:2x2
jax: 0.10.0
libtpu: 0.0.40
codegen_flags: <defaults>
</compile_context>

<pallas_src>
import math
from functools import partial

import jax
import jax.numpy as jnp
import numpy as np
from jax.experimental import pallas as pl
from jax.experimental.pallas import tpu as pltpu

LANE = 128


def _round_up(n, m):
    return ((n + m - 1) // m) * m


def decoder_layer_kernel(
    x_ref,                      # (B*S, Dp)            f32   (pad lanes are zero)
    ln1_g_ref, ln1_b_ref,       # (1, Dp), (1, Dp)      f32   (pad lanes zero)
    wqkv_ref, bqkv_ref,         # (Dp, 3*H*hdp) bf16, (1, 3*H*hdp) f32
    wout_ref, bout_ref,         # (H*hdp, Dp)   bf16, (1, Dp)      f32
    ln2_g_ref, ln2_b_ref,       # (1, Dp), (1, Dp)      f32
    wff1_ref, bff1_ref,         # (Dp, Fp) bf16, (1, Fp) f32
    wff2_ref, bff2_ref,         # (Fp, Dp) bf16, (1, Dp) f32
    o_ref,                      # (B*S, Dp)             f32
    *, batch, nhead, d_model, hd_pad,
):
    eps = 1e-5
    x = x_ref[...]                                    # (BS, Dp) f32
    BS, Dp = x.shape
    S = BS // batch
    inv_d = 1.0 / d_model                             # normalize over the REAL width

    def layer_norm(v, g, b):
        # Single-pass stats: padded lanes of v are exactly zero, so sums over Dp
        # equal sums over the real D; gamma/beta are zero-padded so padded lanes of
        # the output stay exactly zero.
        mu = jnp.sum(v, axis=-1, keepdims=True) * inv_d
        var = jnp.sum(v * v, axis=-1, keepdims=True) * inv_d - mu * mu
        return (v - mu) * jax.lax.rsqrt(var + eps) * g + b

    # ---- self-attention block (pre-norm); dropout = identity ----
    x2 = layer_norm(x, ln1_g_ref[...], ln1_b_ref[...])

    # Fused, per-head-padded QKV projection (one MXU call, lane-dense N).
    # 1/sqrt(hd) was folded into the Q weights/bias host-side.
    qkv = jnp.dot(x2.astype(jnp.bfloat16), wqkv_ref[...],
                  preferred_element_type=jnp.float32) + bqkv_ref[...]   # (BS, 3*H*hdp)

    # Lane-preserving head split: last dim stays 128-wide (hdp); one relayout total.
    qkv_h = qkv.astype(jnp.bfloat16).reshape(batch, S, 3 * nhead, hd_pad)
    qkv_h = jnp.transpose(qkv_h, (0, 2, 1, 3))        # (B, 3*H, S, hdp)
    qh = qkv_h[:, 0:nhead].reshape(batch * nhead, S, hd_pad)
    kh = qkv_h[:, nhead:2 * nhead].reshape(batch * nhead, S, hd_pad)
    vh = qkv_h[:, 2 * nhead:].reshape(batch * nhead, S, hd_pad)

    # Padded head dims are zero on both q and k -> scores are exact.
    scores = jnp.einsum("hqd,hkd->hqk", qh, kh,
                        preferred_element_type=jnp.float32)             # (B*H, S, S)
    scores = scores - jnp.max(scores, axis=-1, keepdims=True)
    probs = jnp.exp(scores)
    probs = probs * pl.reciprocal(jnp.sum(probs, axis=-1, keepdims=True), approx=True)

    ctx = jnp.einsum("hqk,hkd->hqd", probs.astype(jnp.bfloat16), vh,
                     preferred_element_type=jnp.float32)                # (B*H, S, hdp)
    attn = jnp.transpose(ctx.reshape(batch, nhead, S, hd_pad), (0, 2, 1, 3))
    attn = attn.reshape(BS, nhead * hd_pad)

    attn = jnp.dot(attn.astype(jnp.bfloat16), wout_ref[...],
                   preferred_element_type=jnp.float32) + bout_ref[...]  # (BS, Dp)
    x = x + attn                                                        # residual

    # ---- feed-forward block (pre-norm); dropout = identity ----
    x2 = layer_norm(x, ln2_g_ref[...], ln2_b_ref[...])
    h1 = jnp.dot(x2.astype(jnp.bfloat16), wff1_ref[...],
                 preferred_element_type=jnp.float32) + bff1_ref[...]
    h1 = jnp.maximum(h1, 0.0)                                           # ReLU
    h2 = jnp.dot(h1.astype(jnp.bfloat16), wff2_ref[...],
                 preferred_element_type=jnp.float32) + bff2_ref[...]
    x = x + h2                                                          # residual

    o_ref[...] = x.astype(o_ref.dtype)


def transformer_decoder_layer(x_sbd, params, nhead):
    """x_sbd: (S, B, D) as in PyTorch nn.MultiheadAttention default layout."""
    S, B, D = x_sbd.shape
    F = params["ff1_w"].shape[0]
    assert D % nhead == 0
    hd = D // nhead
    scale = 1.0 / math.sqrt(hd)

    Dp = _round_up(D, LANE)
    Fp = _round_up(F, LANE)
    hdp = _round_up(hd, LANE)
    BS = B * S

    # --- host-side layout plumbing (free under XLA) ---
    # Activations: (S,B,D) -> (B*S, Dp), zero-padded lanes.
    x = jnp.transpose(x_sbd, (1, 0, 2)).reshape(BS, D)
    x = jnp.pad(x, ((0, 0), (0, Dp - D)))

    # Fused QKV weight, activation-major, scale folded into Q, laid out per
    # (projection, head) in hdp-wide zero-padded blocks -> tile-aligned head split.
    scale_vec = jnp.concatenate([jnp.full((D,), scale, jnp.float32),
                                 jnp.ones((2 * D,), jnp.float32)])
    w_in_t = (params["in_w"] * scale_vec[:, None]).T                    # (D, 3D)
    b_in_s = params["in_b"].reshape(3 * D) * scale_vec                  # (3D,)
    w_qkv = jnp.pad(w_in_t.reshape(D, 3, nhead, hd),
                    ((0, Dp - D), (0, 0), (0, 0), (0, hdp - hd)))
    w_qkv = w_qkv.reshape(Dp, 3 * nhead * hdp).astype(jnp.bfloat16)
    b_qkv = jnp.pad(b_in_s.reshape(3, nhead, hd),
                    ((0, 0), (0, 0), (0, hdp - hd))).reshape(1, 3 * nhead * hdp)

    # Out-projection rows follow the same head-major, hdp-padded layout.
    w_out = jnp.pad(params["out_w"].T.reshape(nhead, hd, D),
                    ((0, 0), (0, hdp - hd), (0, Dp - D)))
    w_out = w_out.reshape(nhead * hdp, Dp).astype(jnp.bfloat16)
    b_out = jnp.pad(params["out_b"], ((0, 0), (0, Dp - D)))

    ln1_g = jnp.pad(params["ln1_g"], ((0, 0), (0, Dp - D)))
    ln1_b = jnp.pad(params["ln1_b"], ((0, 0), (0, Dp - D)))
    ln2_g = jnp.pad(params["ln2_g"], ((0, 0), (0, Dp - D)))
    ln2_b = jnp.pad(params["ln2_b"], ((0, 0), (0, Dp - D)))

    w_ff1 = jnp.pad(params["ff1_w"].T, ((0, Dp - D), (0, Fp - F))).astype(jnp.bfloat16)
    b_ff1 = jnp.pad(params["ff1_b"], ((0, 0), (0, Fp - F)))
    w_ff2 = jnp.pad(params["ff2_w"].T, ((0, Fp - F), (0, Dp - D))).astype(jnp.bfloat16)
    b_ff2 = jnp.pad(params["ff2_b"], ((0, 0), (0, Dp - D)))

    args = (x, ln1_g, ln1_b, w_qkv, b_qkv, w_out, b_out,
            ln2_g, ln2_b, w_ff1, b_ff1, w_ff2, b_ff2)

    # Explicit scoped-VMEM budget from the actual operand sizes (+ headroom for
    # intermediates), instead of relying on the default limit.
    operand_bytes = sum(int(np.prod(a.shape)) * a.dtype.itemsize for a in args)
    operand_bytes += BS * Dp * 4                                        # output
    vmem_limit = int(min(100 * 1024 * 1024, max(8 * 1024 * 1024, 6 * operand_bytes)))

    out = pl.pallas_call(
        partial(decoder_layer_kernel, batch=B, nhead=nhead, d_model=D, hd_pad=hdp),
        out_shape=jax.ShapeDtypeStruct((BS, Dp), jnp.float32),
        # No grid: one kernel invocation, whole (tiny, padded) operands resident in
        # VMEM, weights fetched exactly once (no double-buffering).
        in_specs=[pl.BlockSpec(memory_space=pltpu.MemorySpace.VMEM)] * len(args),
        out_specs=pl.BlockSpec(memory_space=pltpu.MemorySpace.VMEM),
        compiler_params=pltpu.CompilerParams(vmem_limit_bytes=vmem_limit),
    )(*args)

    out = out[:, :D].reshape(B, S, D)
    return jnp.transpose(out, (1, 0, 2))                                # (S, B, D)


def reference(x_sbd, params, nhead):
    """Pure-JAX f32 reference mirroring the PyTorch forward (eval mode)."""
    S, B, D = x_sbd.shape
    hd = D // nhead
    eps = 1e-5

    def ln(v, g, b):
        mu = jnp.mean(v, axis=-1, keepdims=True)
        var = jnp.mean((v - mu) ** 2, axis=-1, keepdims=True)
        return (v - mu) / jnp.sqrt(var + eps) * g + b

    x = jnp.transpose(x_sbd, (1, 0, 2))                       # (B, S, D)
    x2 = ln(x, params["ln1_g"], params["ln1_b"])
    qkv = jnp.einsum("bsd,ed->bse", x2, params["in_w"]) + params["in_b"][0]
    q, k, v = qkv[..., :D], qkv[..., D:2 * D], qkv[..., 2 * D:]
    q = q.reshape(B, S, nhead, hd)
    k = k.reshape(B, S, nhead, hd)
    v = v.reshape(B, S, nhead, hd)
    s = jnp.einsum("bqhd,bkhd->bhqk", q, k) / np.sqrt(hd)
    p = jax.nn.softmax(s, axis=-1)
    o = jnp.einsum("bhqk,bkhd->bqhd", p, v).reshape(B, S, D)
    o = jnp.einsum("bsd,ed->bse", o, params["out_w"]) + params["out_b"][0]
    x = x + o
    x2 = ln(x, params["ln2_g"], params["ln2_b"])
    h1 = jax.nn.relu(jnp.einsum("bsd,fd->bsf", x2, params["ff1_w"]) + params["ff1_b"][0])
    h2 = jnp.einsum("bsf,df->bsd", h1, params["ff2_w"]) + params["ff2_b"][0]
    x = x + h2
    return jnp.transpose(x, (1, 0, 2))


def init_params(key, d_model, nhead, dim_feedforward):
    ks = jax.random.split(key, 8)
    std = 0.05
    return {
        "ln1_g": jnp.ones((1, d_model), jnp.float32)
                 + 0.01 * jax.random.normal(ks[0], (1, d_model), jnp.float32),
        "ln1_b": 0.01 * jax.random.normal(ks[1], (1, d_model), jnp.float32),
        "in_w":  std * jax.random.normal(ks[2], (3 * d_model, d_model), jnp.float32),
        "in_b":  0.01 * jax.random.normal(ks[3], (1, 3 * d_model), jnp.float32),
        "out_w": std * jax.random.normal(ks[4], (d_model, d_model), jnp.float32),
        "out_b": jnp.zeros((1, d_model), jnp.float32),
        "ln2_g": jnp.ones((1, d_model), jnp.float32),
        "ln2_b": jnp.zeros((1, d_model), jnp.float32),
        "ff1_w": std * jax.random.normal(ks[5], (dim_feedforward, d_model), jnp.float32),
        "ff1_b": 0.01 * jax.random.normal(ks[6], (1, dim_feedforward), jnp.float32),
        "ff2_w": std * jax.random.normal(ks[7], (d_model, dim_feedforward), jnp.float32),
        "ff2_b": jnp.zeros((1, d_model), jnp.float32),
    }


if __name__ == "__main__":
    S, B, D = 8, 2, 32
    NHEAD = 4
    FF = 64

    key = jax.random.PRNGKey(0)
    k_x, k_p = jax.random.split(key)
    x = jax.random.normal(k_x, (S, B, D), jnp.float32)        # PyTorch layout (S, B, D)
    params = init_params(k_p, D, NHEAD, FF)

    out = transformer_decoder_layer(x, params, NHEAD)
    out = jax.block_until_ready(out)

    ref = jax.block_until_ready(reference(x, params, NHEAD))
    # bf16 MXU inputs + approx reciprocal -> loose-but-meaningful tolerance.
    np.testing.assert_allclose(np.asarray(out), np.asarray(ref), rtol=2e-2, atol=2e-2)

    print("KERNEL_OK")
</pallas_src>

<mosaic_0001>
module attributes {stable_mosaic.version = 11 : i64} {
  func.func @decoder_layer_kernel(%arg0: memref<16x128xf32, #tpu.memory_space<vmem>>, %arg1: memref<1x128xf32, #tpu.memory_space<vmem>>, %arg2: memref<1x128xf32, #tpu.memory_space<vmem>>, %arg3: memref<128x1536xbf16, #tpu.memory_space<vmem>>, %arg4: memref<1x1536xf32, #tpu.memory_space<vmem>>, %arg5: memref<512x128xbf16, #tpu.memory_space<vmem>>, %arg6: memref<1x128xf32, #tpu.memory_space<vmem>>, %arg7: memref<1x128xf32, #tpu.memory_space<vmem>>, %arg8: memref<1x128xf32, #tpu.memory_space<vmem>>, %arg9: memref<128x128xbf16, #tpu.memory_space<vmem>>, %arg10: memref<1x128xf32, #tpu.memory_space<vmem>>, %arg11: memref<128x128xbf16, #tpu.memory_space<vmem>>, %arg12: memref<1x128xf32, #tpu.memory_space<vmem>>, %arg13: memref<16x128xf32, #tpu.memory_space<vmem>>) attributes {dimension_semantics = [], scalar_prefetch = 0 : i64, scratch_operands = 0 : i64, tpu.core_type = #tpu.core_type<tc>} {
    %c0 = arith.constant 0 : index
    %c0_0 = arith.constant 0 : index
    %0 = vector.load %arg0[%c0, %c0_0] : memref<16x128xf32, #tpu.memory_space<vmem>>, vector<16x128xf32>
    %c0_1 = arith.constant 0 : index
    %c0_2 = arith.constant 0 : index
    %1 = vector.load %arg1[%c0_1, %c0_2] : memref<1x128xf32, #tpu.memory_space<vmem>>, vector<1x128xf32>
    %c0_3 = arith.constant 0 : index
    %c0_4 = arith.constant 0 : index
    %2 = vector.load %arg2[%c0_3, %c0_4] : memref<1x128xf32, #tpu.memory_space<vmem>>, vector<1x128xf32>
    %cst = arith.constant dense<0.000000e+00> : vector<16xf32>
    %3 = vector.multi_reduction <add>, %0, %cst [1] : vector<16x128xf32> to vector<16xf32>
    %4 = vector.shape_cast %3 : vector<16xf32> to vector<16x1xf32>
    %cst_5 = arith.constant 3.125000e-02 : f32
    %5 = vector.broadcast %cst_5 : f32 to vector<16x1xf32>
    %6 = arith.mulf %4, %5 : vector<16x1xf32>
    %7 = arith.mulf %0, %0 : vector<16x128xf32>
    %cst_6 = arith.constant dense<0.000000e+00> : vector<16xf32>
    %8 = vector.multi_reduction <add>, %7, %cst_6 [1] : vector<16x128xf32> to vector<16xf32>
    %9 = vector.shape_cast %8 : vector<16xf32> to vector<16x1xf32>
    %cst_7 = arith.constant 3.125000e-02 : f32
    %10 = vector.broadcast %cst_7 : f32 to vector<16x1xf32>
    %11 = arith.mulf %9, %10 : vector<16x1xf32>
    %12 = arith.mulf %6, %6 : vector<16x1xf32>
    %13 = arith.subf %11, %12 : vector<16x1xf32>
    %14 = vector.broadcast %6 : vector<16x1xf32> to vector<16x128xf32>
    %15 = arith.subf %0, %14 : vector<16x128xf32>
    %cst_8 = arith.constant 9.99999974E-6 : f32
    %16 = vector.broadcast %cst_8 : f32 to vector<16x1xf32>
    %17 = arith.addf %13, %16 : vector<16x1xf32>
    %18 = math.rsqrt %17 : vector<16x1xf32>
    %19 = vector.broadcast %18 : vector<16x1xf32> to vector<16x128xf32>
    %20 = arith.mulf %15, %19 : vector<16x128xf32>
    %21 = vector.broadcast %1 : vector<1x128xf32> to vector<16x128xf32>
    %22 = arith.mulf %20, %21 : vector<16x128xf32>
    %23 = vector.broadcast %2 : vector<1x128xf32> to vector<16x128xf32>
    %24 = arith.addf %22, %23 : vector<16x128xf32>
    %25 = arith.truncf %24 : vector<16x128xf32> to vector<16x128xbf16>
    %c0_9 = arith.constant 0 : index
    %c0_10 = arith.constant 0 : index
    %26 = vector.load %arg3[%c0_9, %c0_10] : memref<128x1536xbf16, #tpu.memory_space<vmem>>, vector<128x1536xbf16>
    %cst_11 = arith.constant dense<0.000000e+00> : vector<16x1536xf32>
    %27 = tpu.matmul %25, %26, %cst_11 {dimension_numbers = #tpu.dot_dimension_numbers<[1], [0], [0], [1], [0, 0, 1, 1], [], []>} : vector<16x128xbf16>, vector<128x1536xbf16>, vector<16x1536xf32> -> vector<16x1536xf32>
    %c0_12 = arith.constant 0 : index
    %c0_13 = arith.constant 0 : index
    %28 = vector.load %arg4[%c0_12, %c0_13] : memref<1x1536xf32, #tpu.memory_space<vmem>>, vector<1x1536xf32>
    %29 = vector.broadcast %28 : vector<1x1536xf32> to vector<16x1536xf32>
    %30 = arith.addf %27, %29 : vector<16x1536xf32>
    %31 = arith.truncf %30 : vector<16x1536xf32> to vector<16x1536xbf16>
    %32 = vector.shape_cast %31 : vector<16x1536xbf16> to vector<2x8x12x128xbf16>
    %33 = tpu.transpose %32, [0, 2, 1, 3] : vector<2x8x12x128xbf16> -> vector<2x12x8x128xbf16>
    %34 = vector.extract_strided_slice %33 {offsets = [0, 0, 0, 0], sizes = [2, 4, 8, 128], strides = [1, 1, 1, 1]} : vector<2x12x8x128xbf16> to vector<2x4x8x128xbf16>
    %35 = vector.shape_cast %34 : vector<2x4x8x128xbf16> to vector<8x8x128xbf16>
    %36 = vector.extract_strided_slice %33 {offsets = [0, 4, 0, 0], sizes = [2, 4, 8, 128], strides = [1, 1, 1, 1]} : vector<2x12x8x128xbf16> to vector<2x4x8x128xbf16>
    %37 = vector.shape_cast %36 : vector<2x4x8x128xbf16> to vector<8x8x128xbf16>
    %38 = vector.extract_strided_slice %33 {offsets = [0, 8, 0, 0], sizes = [2, 4, 8, 128], strides = [1, 1, 1, 1]} : vector<2x12x8x128xbf16> to vector<2x4x8x128xbf16>
    %39 = vector.shape_cast %38 : vector<2x4x8x128xbf16> to vector<8x8x128xbf16>
    "tpu.trace_start"() <{level = 10 : i32, message = "hqd,hkd->hqk"}> : () -> ()
    %cst_14 = arith.constant dense<0.000000e+00> : vector<8x8x8xf32>
    %40 = tpu.matmul %35, %37, %cst_14 {dimension_numbers = #tpu.dot_dimension_numbers<[2], [2], [1], [1], [0, 0, 0, 1, 1, 1], [0], [0]>} : vector<8x8x128xbf16>, vector<8x8x128xbf16>, vector<8x8x8xf32> -> vector<8x8x8xf32>
    "tpu.trace_stop"() : () -> ()
    %cst_15 = arith.constant dense<0xFF800000> : vector<8x8xf32>
    %41 = vector.multi_reduction <maximumf>, %40, %cst_15 [2] : vector<8x8x8xf32> to vector<8x8xf32>
    %42 = vector.shape_cast %41 : vector<8x8xf32> to vector<8x8x1xf32>
    %43 = vector.broadcast %42 : vector<8x8x1xf32> to vector<8x8x8xf32>
    %44 = arith.subf %40, %43 : vector<8x8x8xf32>
    %45 = math.exp %44 : vector<8x8x8xf32>
    %cst_16 = arith.constant dense<0.000000e+00> : vector<8x8xf32>
    %46 = vector.multi_reduction <add>, %45, %cst_16 [2] : vector<8x8x8xf32> to vector<8x8xf32>
    %47 = vector.shape_cast %46 : vector<8x8xf32> to vector<8x8x1xf32>
    %48 = tpu.reciprocal %47 {approx = true} : vector<8x8x1xf32> -> vector<8x8x1xf32>
    %49 = vector.broadcast %48 : vector<8x8x1xf32> to vector<8x8x8xf32>
    %50 = arith.mulf %45, %49 : vector<8x8x8xf32>
    %51 = arith.truncf %50 : vector<8x8x8xf32> to vector<8x8x8xbf16>
    "tpu.trace_start"() <{level = 10 : i32, message = "hqk,hkd->hqd"}> : () -> ()
    %cst_17 = arith.constant dense<0.000000e+00> : vector<8x8x128xf32>
    %52 = tpu.matmul %51, %39, %cst_17 {dimension_numbers = #tpu.dot_dimension_numbers<[2], [1], [1], [2], [0, 0, 0, 1, 1, 2], [0], [0]>} : vector<8x8x8xbf16>, vector<8x8x128xbf16>, vector<8x8x128xf32> -> vector<8x8x128xf32>
    "tpu.trace_stop"() : () -> ()
    %53 = vector.shape_cast %52 : vector<8x8x128xf32> to vector<2x4x8x128xf32>
    %54 = tpu.transpose %53, [0, 2, 1, 3] : vector<2x4x8x128xf32> -> vector<2x8x4x128xf32>
    %55 = vector.shape_cast %54 : vector<2x8x4x128xf32> to vector<16x512xf32>
    %56 = arith.truncf %55 : vector<16x512xf32> to vector<16x512xbf16>
    %c0_18 = arith.constant 0 : index
    %c0_19 = arith.constant 0 : index
    %57 = vector.load %arg5[%c0_18, %c0_19] : memref<512x128xbf16, #tpu.memory_space<vmem>>, vector<512x128xbf16>
    %cst_20 = arith.constant dense<0.000000e+00> : vector<16x128xf32>
    %58 = tpu.matmul %56, %57, %cst_20 {dimension_numbers = #tpu.dot_dimension_numbers<[1], [0], [0], [1], [0, 0, 1, 1], [], []>} : vector<16x512xbf16>, vector<512x128xbf16>, vector<16x128xf32> -> vector<16x128xf32>
    %c0_21 = arith.constant 0 : index
    %c0_22 = arith.constant 0 : index
    %59 = vector.load %arg6[%c0_21, %c0_22] : memref<1x128xf32, #tpu.memory_space<vmem>>, vector<1x128xf32>
    %60 = vector.broadcast %59 : vector<1x128xf32> to vector<16x128xf32>
    %61 = arith.addf %58, %60 : vector<16x128xf32>
    %62 = arith.addf %0, %61 : vector<16x128xf32>
    %c0_23 = arith.constant 0 : index
    %c0_24 = arith.constant 0 : index
    %63 = vector.load %arg7[%c0_23, %c0_24] : memref<1x128xf32, #tpu.memory_space<vmem>>, vector<1x128xf32>
    %c0_25 = arith.constant 0 : index
    %c0_26 = arith.constant 0 : index
    %64 = vector.load %arg8[%c0_25, %c0_26] : memref<1x128xf32, #tpu.memory_space<vmem>>, vector<1x128xf32>
    %cst_27 = arith.constant dense<0.000000e+00> : vector<16xf32>
    %65 = vector.multi_reduction <add>, %62, %cst_27 [1] : vector<16x128xf32> to vector<16xf32>
    %66 = vector.shape_cast %65 : vector<16xf32> to vector<16x1xf32>
    %cst_28 = arith.constant 3.125000e-02 : f32
    %67 = vector.broadcast %cst_28 : f32 to vector<16x1xf32>
    %68 = arith.mulf %66, %67 : vector<16x1xf32>
    %69 = arith.mulf %62, %62 : vector<16x128xf32>
    %cst_29 = arith.constant dense<0.000000e+00> : vector<16xf32>
    %70 = vector.multi_reduction <add>, %69, %cst_29 [1] : vector<16x128xf32> to vector<16xf32>
    %71 = vector.shape_cast %70 : vector<16xf32> to vector<16x1xf32>
    %cst_30 = arith.constant 3.125000e-02 : f32
    %72 = vector.broadcast %cst_30 : f32 to vector<16x1xf32>
    %73 = arith.mulf %71, %72 : vector<16x1xf32>
    %74 = arith.mulf %68, %68 : vector<16x1xf32>
    %75 = arith.subf %73, %74 : vector<16x1xf32>
    %76 = vector.broadcast %68 : vector<16x1xf32> to vector<16x128xf32>
    %77 = arith.subf %62, %76 : vector<16x128xf32>
    %cst_31 = arith.constant 9.99999974E-6 : f32
    %78 = vector.broadcast %cst_31 : f32 to vector<16x1xf32>
    %79 = arith.addf %75, %78 : vector<16x1xf32>
    %80 = math.rsqrt %79 : vector<16x1xf32>
    %81 = vector.broadcast %80 : vector<16x1xf32> to vector<16x128xf32>
    %82 = arith.mulf %77, %81 : vector<16x128xf32>
    %83 = vector.broadcast %63 : vector<1x128xf32> to vector<16x128xf32>
    %84 = arith.mulf %82, %83 : vector<16x128xf32>
    %85 = vector.broadcast %64 : vector<1x128xf32> to vector<16x128xf32>
    %86 = arith.addf %84, %85 : vector<16x128xf32>
    %87 = arith.truncf %86 : vector<16x128xf32> to vector<16x128xbf16>
    %c0_32 = arith.constant 0 : index
    %c0_33 = arith.constant 0 : index
    %88 = vector.load %arg9[%c0_32, %c0_33] : memref<128x128xbf16, #tpu.memory_space<vmem>>, vector<128x128xbf16>
    %cst_34 = arith.constant dense<0.000000e+00> : vector<16x128xf32>
    %89 = tpu.matmul %87, %88, %cst_34 {dimension_numbers = #tpu.dot_dimension_numbers<[1], [0], [0], [1], [0, 0, 1, 1], [], []>} : vector<16x128xbf16>, vector<128x128xbf16>, vector<16x128xf32> -> vector<16x128xf32>
    %c0_35 = arith.constant 0 : index
    %c0_36 = arith.constant 0 : index
    %90 = vector.load %arg10[%c0_35, %c0_36] : memref<1x128xf32, #tpu.memory_space<vmem>>, vector<1x128xf32>
    %91 = vector.broadcast %90 : vector<1x128xf32> to vector<16x128xf32>
    %92 = arith.addf %89, %91 : vector<16x128xf32>
    %cst_37 = arith.constant 0.000000e+00 : f32
    %93 = vector.broadcast %cst_37 : f32 to vector<16x128xf32>
    %94 = arith.maximumf %92, %93 : vector<16x128xf32>
    %95 = arith.truncf %94 : vector<16x128xf32> to vector<16x128xbf16>
    %c0_38 = arith.constant 0 : index
    %c0_39 = arith.constant 0 : index
    %96 = vector.load %arg11[%c0_38, %c0_39] : memref<128x128xbf16, #tpu.memory_space<vmem>>, vector<128x128xbf16>
    %cst_40 = arith.constant dense<0.000000e+00> : vector<16x128xf32>
    %97 = tpu.matmul %95, %96, %cst_40 {dimension_numbers = #tpu.dot_dimension_numbers<[1], [0], [0], [1], [0, 0, 1, 1], [], []>} : vector<16x128xbf16>, vector<128x128xbf16>, vector<16x128xf32> -> vector<16x128xf32>
    %c0_41 = arith.constant 0 : index
    %c0_42 = arith.constant 0 : index
    %98 = vector.load %arg12[%c0_41, %c0_42] : memref<1x128xf32, #tpu.memory_space<vmem>>, vector<1x128xf32>
    %99 = vector.broadcast %98 : vector<1x128xf32> to vector<16x128xf32>
    %100 = arith.addf %97, %99 : vector<16x128xf32>
    %101 = arith.addf %62, %100 : vector<16x128xf32>
    %c0_43 = arith.constant 0 : index
    %c0_44 = arith.constant 0 : index
    %102 = vector.load %arg13[%c0_43, %c0_44] : memref<16x128xf32, #tpu.memory_space<vmem>>, vector<16x128xf32>
    tpu.vector_store %arg13[%c0_43, %c0_44], %101 {strides = array<i32>} : memref<16x128xf32, #tpu.memory_space<vmem>>, vector<16x128xf32>,
    return
  }
}

</mosaic_0001>

<llo_original>
// kernel: tpu_custom_call.1
$region0: #{tpu_custom_call.1}
  #allocation0 [shape = 'u32[]', space=smem, size = 0x4, offset = 0x4, fixed_abs, tag = 'smem constant byte address 0x4 - core index']
  #allocation1 [shape = 'u32[72,128]{1,0:T(1,128)}', space=vmem, size = 0x9000, scoped, tag = 'internal scratch']
  %s0 = inlined_call_operand.hbm [shape: f32[16,128], index: 0, kind: input, shape index: {}]
  %s1 = inlined_call_operand.hbm [shape: f32[1,128], index: 1, kind: input, shape index: {}]
  %s2 = inlined_call_operand.vmem [shape: f32[1,128], index: 2, kind: input, shape index: {}]
  %s3 = inlined_call_operand.hbm [shape: bf16[128,1536], index: 3, kind: input, shape index: {}]
  %s4 = inlined_call_operand.hbm [shape: f32[1,1536], index: 4, kind: input, shape index: {}]
  %s5 = inlined_call_operand.hbm [shape: bf16[512,128], index: 5, kind: input, shape index: {}]
  %s6 = inlined_call_operand.vmem [shape: f32[1,128], index: 6, kind: input, shape index: {}]
  %s7 = inlined_call_operand.vmem [shape: f32[1,128], index: 7, kind: input, shape index: {}]
  %s8 = inlined_call_operand.vmem [shape: f32[1,128], index: 8, kind: input, shape index: {}]
  %s9 = inlined_call_operand.hbm [shape: bf16[128,128], index: 9, kind: input, shape index: {}]
  %s10 = inlined_call_operand.vmem [shape: f32[1,128], index: 10, kind: input, shape index: {}]
  %s11 = inlined_call_operand.hbm [shape: bf16[128,128], index: 11, kind: input, shape index: {}]
  %s12 = inlined_call_operand.vmem [shape: f32[1,128], index: 12, kind: input, shape index: {}]
  %s13 = inlined_call_operand.hbm [shape: f32[16,128], index: 13, kind: output, shape index: {}]
  %s14 = sld [smem:[#allocation0]]
  $region90: #{tpu_custom_call.1} parent=0
    _
  %s16 = ssub.s32 1, %s14
  %s17 = scalar_select 0, %s16, %s14
  $region1: #{tpu_custom_call.1} parent=0
    #allocation2 [shape = 'u8[8192]{0}', space=vmem, size = 0x2000, scoped, tag = 'input window, operand 0, single buffered']
    #allocation3 [shape = 's32[1]{0}', space=sflag, size = 0x4, scoped, tag = 'scoped memory for tpu_custom_call.1']
    #allocation4 [shape = 's32[1]{0}', space=sflag, size = 0x4, scoped, tag = 'scoped memory for tpu_custom_call.1']
    #allocation5 [shape = 'u8[512]{0}', space=vmem, size = 0x400, scoped, tag = 'input window, operand 1, single buffered']
    #allocation6 [shape = 's32[1]{0}', space=sflag, size = 0x4, scoped, tag = 'scoped memory for tpu_custom_call.1']
    #allocation7 [shape = 'u8[393216]{0}', space=vmem, size = 0x60000, scoped, tag = 'input window, operand 3, single buffered']
    #allocation8 [shape = 'u8[6144]{0}', space=vmem, size = 0x1800, scoped, tag = 'input window, operand 4, single buffered']
    #allocation9 [shape = 's32[1]{0}', space=sflag, size = 0x4, scoped, tag = 'scoped memory for tpu_custom_call.1']
    #allocation10 [shape = 'u8[131072]{0}', space=vmem, size = 0x20000, scoped, tag = 'input window, operand 5, single buffered']
    #allocation11 [shape = 'u8[32768]{0}', space=vmem, size = 0x8000, scoped, tag = 'input window, operand 9, single buffered']
    #allocation12 [shape = 's32[1]{0}', space=sflag, size = 0x4, scoped, tag = 'scoped memory for tpu_custom_call.1']
    #allocation13 [shape = 'u8[32768]{0}', space=vmem, size = 0x8000, scoped, tag = 'input window, operand 11, single buffered']
    #allocation14 [shape = 'u8[8192]{0}', space=vmem, size = 0x2000, scoped, tag = 'output window, operand 0, single buffered']
    %18 = vsyncpa [#allocation3], 0
    %19 = vsyncpa [#allocation6], 0
    %20 = vsyncpa [#allocation9], 0
    %21 = vsyncpa [#allocation12], 0
    %22 = vsyncpa [#allocation4], 0
    // Predicated region
    $region2: #{tpu_custom_call.1} parent=1 // pred_check
      _
    $region3: #{tpu_custom_call.1} parent=1 // pred_check_branch
      %24 = sbr.rel (0) target = $region5
    $region4: #{tpu_custom_call.1} parent=1 // pred_region
      %26 = vsyncadd [#allocation3], 0
      %s27 = sshll.u32 %s0, 4
      %s28 = int_to_ptr.hbm [resolvable:$true] %s27
      %s29 = sshll.u32 [#allocation2], 4
      %s30 = int_to_ptr.vmem [resolvable:$true] %s29
      %35 = dma.hbm_to_vmem [thread:$0]  %s28, 256, %s30, [#allocation3], 128, 128, 8
    $region5: #{tpu_custom_call.1} parent=1 // pred_fallthru
      _
    // Predicated region
    $region6: #{tpu_custom_call.1} parent=1 // pred_check
      _
    $region7: #{tpu_custom_call.1} parent=1 // pred_check_branch
      %37 = sbr.rel (0) target = $region9
    $region8: #{tpu_custom_call.1} parent=1 // pred_region
      %39 = vsyncadd [#allocation6], 0
      %s41 = sshll.u32 %s1, 4
      %s42 = int_to_ptr.hbm [resolvable:$true] %s41
      %s43 = sshll.u32 [#allocation5], 4
      %s44 = int_to_ptr.vmem [resolvable:$true] %s43
      %46 = dma.hbm_to_vmem [thread:$0]  %s42, 16, %s44, [#allocation6]
    $region9: #{tpu_custom_call.1} parent=1 // pred_fallthru
      _
    // Predicated region
    $region10: #{tpu_custom_call.1} parent=1 // pred_check
      _
    $region11: #{tpu_custom_call.1} parent=1 // pred_check_branch
      %48 = sbr.rel (0) target = $region13
    $region12: #{tpu_custom_call.1} parent=1 // pred_region
      _
    $region13: #{tpu_custom_call.1} parent=1 // pred_fallthru
      _
    // Predicated region
    $region14: #{tpu_custom_call.1} parent=1 // pred_check
      _
    $region15: #{tpu_custom_call.1} parent=1 // pred_check_branch
      %50 = sbr.rel (0) target = $region17
    $region16: #{tpu_custom_call.1} parent=1 // pred_region
      %52 = vsyncadd [#allocation6], 0
      %s53 = sshll.u32 %s3, 4
      %s54 = int_to_ptr.hbm [resolvable:$true] %s53
      %s55 = sshll.u32 [#allocation7], 4
      %s56 = int_to_ptr.vmem [resolvable:$true] %s55
      %61 = dma.hbm_to_vmem [thread:$0]  %s54, 12288, %s56, [#allocation6], 768, 768, 48
    $region17: #{tpu_custom_call.1} parent=1 // pred_fallthru
      _
    // Predicated region
    $region18: #{tpu_custom_call.1} parent=1 // pred_check
      _
    $region19: #{tpu_custom_call.1} parent=1 // pred_check_branch
      %63 = sbr.rel (0) target = $region21
    $region20: #{tpu_custom_call.1} parent=1 // pred_region
      %65 = vsyncadd [#allocation9], 0
      %s67 = sshll.u32 %s4, 4
      %s68 = int_to_ptr.hbm [resolvable:$true] %s67
      %s69 = sshll.u32 [#allocation8], 4
      %s70 = int_to_ptr.vmem [resolvable:$true] %s69
      %72 = dma.hbm_to_vmem [thread:$0]  %s68, 192, %s70, [#allocation9]
    $region21: #{tpu_custom_call.1} parent=1 // pred_fallthru
      _
    // Predicated region
    $region22: #{tpu_custom_call.1} parent=1 // pred_check
      _
    $region23: #{tpu_custom_call.1} parent=1 // pred_check_branch
      %74 = sbr.rel (0) target = $region25
    $region24: #{tpu_custom_call.1} parent=1 // pred_region
      %76 = vsyncadd [#allocation9], 0
      %s77 = sshll.u32 %s5, 4
      %s78 = int_to_ptr.hbm [resolvable:$true] %s77
      %s79 = sshll.u32 [#allocation10], 4
      %s80 = int_to_ptr.vmem [resolvable:$true] %s79
      %85 = dma.hbm_to_vmem [thread:$0]  %s78, 4096, %s80, [#allocation9], 64, 64, 4
    $region25: #{tpu_custom_call.1} parent=1 // pred_fallthru
      _
    // Predicated region
    $region26: #{tpu_custom_call.1} parent=1 // pred_check
      _
    $region27: #{tpu_custom_call.1} parent=1 // pred_check_branch
      %87 = sbr.rel (0) target = $region29
    $region28: #{tpu_custom_call.1} parent=1 // pred_region
      _
    $region29: #{tpu_custom_call.1} parent=1 // pred_fallthru
      _
    // Predicated region
    $region30: #{tpu_custom_call.1} parent=1 // pred_check
      _
    $region31: #{tpu_custom_call.1} parent=1 // pred_check_branch
      %89 = sbr.rel (0) target = $region33
    $region32: #{tpu_custom_call.1} parent=1 // pred_region
      _
    $region33: #{tpu_custom_call.1} parent=1 // pred_fallthru
      _
    // Predicated region
    $region34: #{tpu_custom_call.1} parent=1 // pred_check
      _
    $region35: #{tpu_custom_call.1} parent=1 // pred_check_branch
      %91 = sbr.rel (0) target = $region37
    $region36: #{tpu_custom_call.1} parent=1 // pred_region
      _
    $region37: #{tpu_custom_call.1} parent=1 // pred_fallthru
      _
    // Predicated region
    $region38: #{tpu_custom_call.1} parent=1 // pred_check
      _
    $region39: #{tpu_custom_call.1} parent=1 // pred_check_branch
      %93 = sbr.rel (0) target = $region41
    $region40: #{tpu_custom_call.1} parent=1 // pred_region
      %95 = vsyncadd [#allocation12], 0
      %s96 = sshll.u32 %s9, 4
      %s97 = int_to_ptr.hbm [resolvable:$true] %s96
      %s98 = sshll.u32 [#allocation11], 4
      %s99 = int_to_ptr.vmem [resolvable:$true] %s98
      %104 = dma.hbm_to_vmem [thread:$0]  %s97, 1024, %s99, [#allocation12], 64, 64, 4
    $region41: #{tpu_custom_call.1} parent=1 // pred_fallthru
      _
    // Predicated region
    $region42: #{tpu_custom_call.1} parent=1 // pred_check
      _
    $region43: #{tpu_custom_call.1} parent=1 // pred_check_branch
      %106 = sbr.rel (0) target = $region45
    $region44: #{tpu_custom_call.1} parent=1 // pred_region
      _
    $region45: #{tpu_custom_call.1} parent=1 // pred_fallthru
      _
    // Predicated region
    $region46: #{tpu_custom_call.1} parent=1 // pred_check
      _
    $region47: #{tpu_custom_call.1} parent=1 // pred_check_branch
      %108 = sbr.rel (0) target = $region49
    $region48: #{tpu_custom_call.1} parent=1 // pred_region
      %110 = vsyncadd [#allocation12], 0
      %s111 = sshll.u32 %s11, 4
      %s112 = int_to_ptr.hbm [resolvable:$true] %s111
      %s113 = sshll.u32 [#allocation13], 4
      %s114 = int_to_ptr.vmem [resolvable:$true] %s113
      %119 = dma.hbm_to_vmem [thread:$0]  %s112, 1024, %s114, [#allocation12], 64, 64, 4
    $region49: #{tpu_custom_call.1} parent=1 // pred_fallthru
      _
    // Predicated region
    $region50: #{tpu_custom_call.1} parent=1 // pred_check
      _
    $region51: #{tpu_custom_call.1} parent=1 // pred_check_branch
      %121 = sbr.rel (0) target = $region53
    $region52: #{tpu_custom_call.1} parent=1 // pred_region
      _
    $region53: #{tpu_custom_call.1} parent=1 // pred_fallthru
      _
    // Predicated region
    $region54: #{tpu_custom_call.1} parent=1 // pred_check
      _
    $region55: #{tpu_custom_call.1} parent=1 // pred_check_branch
      %123 = sbr.rel (0) target = $region57
    $region56: #{tpu_custom_call.1} parent=1 // pred_region
      %125 = dma.done [#allocation3], 256
    $region57: #{tpu_custom_call.1} parent=1 // pred_fallthru
      _
    // Predicated region
    $region58: #{tpu_custom_call.1} parent=1 // pred_check
      _
    $region59: #{tpu_custom_call.1} parent=1 // pred_check_branch
      %127 = sbr.rel (0) target = $region61
    $region60: #{tpu_custom_call.1} parent=1 // pred_region
      %129 = dma.done [#allocation6], 16
    $region61: #{tpu_custom_call.1} parent=1 // pred_fallthru
      _
    // Predicated region
    $region62: #{tpu_custom_call.1} parent=1 // pred_check
      _
    $region63: #{tpu_custom_call.1} parent=1 // pred_check_branch
      %131 = sbr.rel (0) target = $region65
    $region64: #{tpu_custom_call.1} parent=1 // pred_region
      %133 = dma.done [#allocation6], 12288
    $region65: #{tpu_custom_call.1} parent=1 // pred_fallthru
      _
    // Predicated region
    $region66: #{tpu_custom_call.1} parent=1 // pred_check
      _
    $region67: #{tpu_custom_call.1} parent=1 // pred_check_branch
      %135 = sbr.rel (0) target = $region69
    $region68: #{tpu_custom_call.1} parent=1 // pred_region
      %137 = dma.done [#allocation9], 192
    $region69: #{tpu_custom_call.1} parent=1 // pred_fallthru
      _
    // Predicated region
    $region70: #{tpu_custom_call.1} parent=1 // pred_check
      _
    $region71: #{tpu_custom_call.1} parent=1 // pred_check_branch
      %139 = sbr.rel (0) target = $region73
    $region72: #{tpu_custom_call.1} parent=1 // pred_region
      %141 = dma.done [#allocation9], 4096
    $region73: #{tpu_custom_call.1} parent=1 // pred_fallthru
      _
    // Predicated region
    $region74: #{tpu_custom_call.1} parent=1 // pred_check
      _
    $region75: #{tpu_custom_call.1} parent=1 // pred_check_branch
      %143 = sbr.rel (0) target = $region77
    $region76: #{tpu_custom_call.1} parent=1 // pred_region
      %145 = dma.done [#allocation12], 1024
    $region77: #{tpu_custom_call.1} parent=1 // pred_fallthru
      _
    // Predicated region
    $region78: #{tpu_custom_call.1} parent=1 // pred_check
      _
    $region79: #{tpu_custom_call.1} parent=1 // pred_check_branch
      %147 = sbr.rel (0) target = $region81
    $region80: #{tpu_custom_call.1} parent=1 // pred_region
      %149 = dma.done [#allocation12], 1024
    $region81: #{tpu_custom_call.1} parent=1 // pred_fallthru
      _
    %v151 = vld [vmem:[#allocation2] sm:$0xff]
    %v152 = vld [vmem:[#allocation2 + $0x8] sm:$0xff]
    %v153 = vld [vmem:[#allocation5] sm:$0x1]
    %v154 = vld [vmem:[%s2] sm:$0x1]
    %155 = vadd.xlane.f32.xlu0 %v151
    %v156 = vpop.xlane.xlu0 %155
    %157 = vadd.xlane.f32.xlu0 %v152
    %v158 = vpop.xlane.xlu0 %157
    %v159 = vmul.f32 %v156, 0.03125
    %v160 = vmul.f32 %v158, 0.03125
    %v161 = vmul.f32 %v151, %v151
    %v162 = vmul.f32 %v152, %v152
    %163 = vadd.xlane.f32.xlu0 %v161
    %v164 = vpop.xlane.xlu0 %163
    %165 = vadd.xlane.f32.xlu0 %v162
    %v166 = vpop.xlane.xlu0 %165
    %v167 = vmul.f32 %v164, 0.03125
    %v168 = vmul.f32 %v166, 0.03125
    %v169 = vmul.f32 %v159, %v159
    %v170 = vmul.f32 %v160, %v160
    %v171 = vsub.f32 %v167, %v169
    %v172 = vsub.f32 %v168, %v170
    %v173 = vsub.f32 %v151, %v159
    %v174 = vsub.f32 %v152, %v160
    %v175 = vadd.f32 %v171, 1e-05
    %v176 = vadd.f32 %v172, 1e-05
    %v177 = vrsqrt.pop %v175
    %v178 = vmul.f32 %v177, %v175
    %v179 = vmul.f32 %v178, %v177
    %v180 = vmul.f32 0.5, %v179
    %v181 = vsub.f32 1.5, %v180
    %v182 = vmul.f32 %v177, %v181
    %vm183 = vweird.f32 %v175
    %vm184 = vweird.f32 %v177
    %vm185 = vmor %vm183, %vm184
    %v186 = vsel %vm185, %v177, %v182
    %v187 = vrsqrt.pop %v176
    %v188 = vmul.f32 %v187, %v176
    %v189 = vmul.f32 %v188, %v187
    %v190 = vmul.f32 0.5, %v189
    %v191 = vsub.f32 1.5, %v190
    %v192 = vmul.f32 %v187, %v191
    %vm193 = vweird.f32 %v176
    %vm194 = vweird.f32 %v187
    %vm195 = vmor %vm193, %vm194
    %v196 = vsel %vm195, %v187, %v192
    %v197 = vmul.f32 %v173, %v186
    %v198 = vmul.f32 %v174, %v196
    %v200 = vperm.slane %v153, 0
    %v202 = vmul.f32 %v197, %v200
    %v203 = vmul.f32 %v198, %v200
    %v205 = vperm.slane %v154, 0
    %v207 = vadd.f32 %v202, %v205
    %v208 = vadd.f32 %v203, %v205
    %v209 = vpack.c.bf16 %v208, %v207
    %v210 = vld [vmem:[#allocation7] sm:$0xff]
    %v211 = vld [vmem:[#allocation7 + $0x8] sm:$0xff]
    %v212 = vld [vmem:[#allocation7 + $0x10] sm:$0xff]
    %v213 = vld [vmem:[#allocation7 + $0x18] sm:$0xff]
    %v214 = vld [vmem:[#allocation7 + $0x20] sm:$0xff]
    %v215 = vld [vmem:[#allocation7 + $0x28] sm:$0xff]
    %v216 = vld [vmem:[#allocation7 + $0x30] sm:$0xff]
    %v217 = vld [vmem:[#allocation7 + $0x38] sm:$0xff]
    %v218 = vld [vmem:[#allocation7 + $0x40] sm:$0xff]
    %v219 = vld [vmem:[#allocation7 + $0x48] sm:$0xff]
    %v220 = vld [vmem:[#allocation7 + $0x50] sm:$0xff]
    %v221 = vld [vmem:[#allocation7 + $0x58] sm:$0xff]
    %v222 = vld [vmem:[#allocation7 + $0x60] sm:$0xff]
    %v223 = vld [vmem:[#allocation7 + $0x68] sm:$0xff]
    %v224 = vld [vmem:[#allocation7 + $0x70] sm:$0xff]
    %v225 = vld [vmem:[#allocation7 + $0x78] sm:$0xff]
    %v226 = vld [vmem:[#allocation7 + $0x80] sm:$0xff]
    %v227 = vld [vmem:[#allocation7 + $0x88] sm:$0xff]
    %v228 = vld [vmem:[#allocation7 + $0x90] sm:$0xff]
    %v229 = vld [vmem:[#allocation7 + $0x98] sm:$0xff]
    %v230 = vld [vmem:[#allocation7 + $0xa0] sm:$0xff]
    %v231 = vld [vmem:[#allocation7 + $0xa8] sm:$0xff]
    %v232 = vld [vmem:[#allocation7 + $0xb0] sm:$0xff]
    %v233 = vld [vmem:[#allocation7 + $0xb8] sm:$0xff]
    %v234 = vld [vmem:[#allocation7 + $0xc0] sm:$0xff]
    %v235 = vld [vmem:[#allocation7 + $0xc8] sm:$0xff]
    %v236 = vld [vmem:[#allocation7 + $0xd0] sm:$0xff]
    %v237 = vld [vmem:[#allocation7 + $0xd8] sm:$0xff]
    %v238 = vld [vmem:[#allocation7 + $0xe0] sm:$0xff]
    %v239 = vld [vmem:[#allocation7 + $0xe8] sm:$0xff]
    %v240 = vld [vmem:[#allocation7 + $0xf0] sm:$0xff]
    %v241 = vld [vmem:[#allocation7 + $0xf8] sm:$0xff]
    %v242 = vld [vmem:[#allocation7 + $0x100] sm:$0xff]
    %v243 = vld [vmem:[#allocation7 + $0x108] sm:$0xff]
    %v244 = vld [vmem:[#allocation7 + $0x110] sm:$0xff]
    %v245 = vld [vmem:[#allocation7 + $0x118] sm:$0xff]
    %v246 = vld [vmem:[#allocation7 + $0x120] sm:$0xff]
    %v247 = vld [vmem:[#allocation7 + $0x128] sm:$0xff]
    %v248 = vld [vmem:[#allocation7 + $0x130] sm:$0xff]
    %v249 = vld [vmem:[#allocation7 + $0x138] sm:$0xff]
    %v250 = vld [vmem:[#allocation7 + $0x140] sm:$0xff]
    %v251 = vld [vmem:[#allocation7 + $0x148] sm:$0xff]
    %v252 = vld [vmem:[#allocation7 + $0x150] sm:$0xff]
    %v253 = vld [vmem:[#allocation7 + $0x158] sm:$0xff]
    %v254 = vld [vmem:[#allocation7 + $0x160] sm:$0xff]
    %v255 = vld [vmem:[#allocation7 + $0x168] sm:$0xff]
    %v256 = vld [vmem:[#allocation7 + $0x170] sm:$0xff]
    %v257 = vld [vmem:[#allocation7 + $0x178] sm:$0xff]
    %v258 = vld [vmem:[#allocation7 + $0x180] sm:$0xff]
    %v259 = vld [vmem:[#allocation7 + $0x188] sm:$0xff]
    %v260 = vld [vmem:[#allocation7 + $0x190] sm:$0xff]
    %v261 = vld [vmem:[#allocation7 + $0x198] sm:$0xff]
    %v262 = vld [vmem:[#allocation7 + $0x1a0] sm:$0xff]
    %v263 = vld [vmem:[#allocation7 + $0x1a8] sm:$0xff]
    %v264 = vld [vmem:[#allocation7 + $0x1b0] sm:$0xff]
    %v265 = vld [vmem:[#allocation7 + $0x1b8] sm:$0xff]
    %v266 = vld [vmem:[#allocation7 + $0x1c0] sm:$0xff]
    %v267 = vld [vmem:[#allocation7 + $0x1c8] sm:$0xff]
    %v268 = vld [vmem:[#allocation7 + $0x1d0] sm:$0xff]
    %v269 = vld [vmem:[#allocation7 + $0x1d8] sm:$0xff]
    %v270 = vld [vmem:[#allocation7 + $0x1e0] sm:$0xff]
    %v271 = vld [vmem:[#allocation7 + $0x1e8] sm:$0xff]
    %v272 = vld [vmem:[#allocation7 + $0x1f0] sm:$0xff]
    %v273 = vld [vmem:[#allocation7 + $0x1f8] sm:$0xff]
    %v274 = vld [vmem:[#allocation7 + $0x200] sm:$0xff]
    %v275 = vld [vmem:[#allocation7 + $0x208] sm:$0xff]
    %v276 = vld [vmem:[#allocation7 + $0x210] sm:$0xff]
    %v277 = vld [vmem:[#allocation7 + $0x218] sm:$0xff]
    %v278 = vld [vmem:[#allocation7 + $0x220] sm:$0xff]
    %v279 = vld [vmem:[#allocation7 + $0x228] sm:$0xff]
    %v280 = vld [vmem:[#allocation7 + $0x230] sm:$0xff]
    %v281 = vld [vmem:[#allocation7 + $0x238] sm:$0xff]
    %v282 = vld [vmem:[#allocation7 + $0x240] sm:$0xff]
    %v283 = vld [vmem:[#allocation7 + $0x248] sm:$0xff]
    %v284 = vld [vmem:[#allocation7 + $0x250] sm:$0xff]
    %v285 = vld [vmem:[#allocation7 + $0x258] sm:$0xff]
    %v286 = vld [vmem:[#allocation7 + $0x260] sm:$0xff]
    %v287 = vld [vmem:[#allocation7 + $0x268] sm:$0xff]
    %v288 = vld [vmem:[#allocation7 + $0x270] sm:$0xff]
    %v289 = vld [vmem:[#allocation7 + $0x278] sm:$0xff]
    %v290 = vld [vmem:[#allocation7 + $0x280] sm:$0xff]
    %v291 = vld [vmem:[#allocation7 + $0x288] sm:$0xff]
    %v292 = vld [vmem:[#allocation7 + $0x290] sm:$0xff]
    %v293 = vld [vmem:[#allocation7 + $0x298] sm:$0xff]
    %v294 = vld [vmem:[#allocation7 + $0x2a0] sm:$0xff]
    %v295 = vld [vmem:[#allocation7 + $0x2a8] sm:$0xff]
    %v296 = vld [vmem:[#allocation7 + $0x2b0] sm:$0xff]
    %v297 = vld [vmem:[#allocation7 + $0x2b8] sm:$0xff]
    %v298 = vld [vmem:[#allocation7 + $0x2c0] sm:$0xff]
    %v299 = vld [vmem:[#allocation7 + $0x2c8] sm:$0xff]
    %v300 = vld [vmem:[#allocation7 + $0x2d0] sm:$0xff]
    %v301 = vld [vmem:[#allocation7 + $0x2d8] sm:$0xff]
    %v302 = vld [vmem:[#allocation7 + $0x2e0] sm:$0xff]
    %v303 = vld [vmem:[#allocation7 + $0x2e8] sm:$0xff]
    %v304 = vld [vmem:[#allocation7 + $0x2f0] sm:$0xff]
    %v305 = vld [vmem:[#allocation7 + $0x2f8] sm:$0xff]
    %v306 = vld [vmem:[#allocation8] sm:$0xff]
    %v307 = vld [vmem:[#allocation8 + $0x8] sm:$0xf]
    %v310 = vperm.slane %v306, 0
    %v311 = vperm.slane %v306, 1
    %v312 = vperm.slane %v306, 2
    %v313 = vperm.slane %v306, 3
    %v314 = vperm.slane %v306, 4
    %v315 = vperm.slane %v306, 5
    %v316 = vperm.slane %v306, 6
    %v317 = vperm.slane %v306, 7
    %v318 = vperm.slane %v307, 0
    %v319 = vperm.slane %v307, 1
    %v320 = vperm.slane %v307, 2
    %v321 = vperm.slane %v307, 3
    %v430 = vunpack.c.l.b16 %v210
    %v431 = vunpack.c.h.b16 %v210
    %v432 = vunpack.c.l.b16 %v211
    %v433 = vunpack.c.h.b16 %v211
    %v434 = vunpack.c.l.b16 %v212
    %v435 = vunpack.c.h.b16 %v212
    %v436 = vunpack.c.l.b16 %v213
    %v437 = vunpack.c.h.b16 %v213
    %v438 = vunpack.c.l.b16 %v214
    %v439 = vunpack.c.h.b16 %v214
    %v440 = vunpack.c.l.b16 %v215
    %v441 = vunpack.c.h.b16 %v215
    %v442 = vunpack.c.l.b16 %v216
    %v443 = vunpack.c.h.b16 %v216
    %v444 = vunpack.c.l.b16 %v217
    %v445 = vunpack.c.h.b16 %v217
    %v446 = vunpack.c.l.b16 %v218
    %v447 = vunpack.c.h.b16 %v218
    %v448 = vunpack.c.l.b16 %v219
    %v449 = vunpack.c.h.b16 %v219
    %v450 = vunpack.c.l.b16 %v220
    %v451 = vunpack.c.h.b16 %v220
    %v452 = vunpack.c.l.b16 %v221
    %v453 = vunpack.c.h.b16 %v221
    %v454 = vunpack.c.l.b16 %v222
    %v455 = vunpack.c.h.b16 %v222
    %v456 = vunpack.c.l.b16 %v223
    %v457 = vunpack.c.h.b16 %v223
    %v458 = vunpack.c.l.b16 %v224
    %v459 = vunpack.c.h.b16 %v224
    %v460 = vunpack.c.l.b16 %v225
    %v461 = vunpack.c.h.b16 %v225
    %v462 = vunpack.c.l.b16 %v226
    %v463 = vunpack.c.h.b16 %v226
    %v464 = vunpack.c.l.b16 %v227
    %v465 = vunpack.c.h.b16 %v227
    %v466 = vunpack.c.l.b16 %v228
    %v467 = vunpack.c.h.b16 %v228
    %v468 = vunpack.c.l.b16 %v229
    %v469 = vunpack.c.h.b16 %v229
    %v470 = vunpack.c.l.b16 %v230
    %v471 = vunpack.c.h.b16 %v230
    %v472 = vunpack.c.l.b16 %v231
    %v473 = vunpack.c.h.b16 %v231
    %v474 = vunpack.c.l.b16 %v232
    %v475 = vunpack.c.h.b16 %v232
    %v476 = vunpack.c.l.b16 %v233
    %v477 = vunpack.c.h.b16 %v233
    %v478 = vunpack.c.l.b16 %v234
    %v479 = vunpack.c.h.b16 %v234
    %v480 = vunpack.c.l.b16 %v235
    %v481 = vunpack.c.h.b16 %v235
    %v482 = vunpack.c.l.b16 %v236
    %v483 = vunpack.c.h.b16 %v236
    %v484 = vunpack.c.l.b16 %v237
    %v485 = vunpack.c.h.b16 %v237
    %v486 = vunpack.c.l.b16 %v238
    %v487 = vunpack.c.h.b16 %v238
    %v488 = vunpack.c.l.b16 %v239
    %v489 = vunpack.c.h.b16 %v239
    %v490 = vunpack.c.l.b16 %v240
    %v491 = vunpack.c.h.b16 %v240
    %v492 = vunpack.c.l.b16 %v241
    %v493 = vunpack.c.h.b16 %v241
    %v494 = vunpack.c.l.b16 %v242
    %v495 = vunpack.c.h.b16 %v242
    %v496 = vunpack.c.l.b16 %v243
    %v497 = vunpack.c.h.b16 %v243
    %v498 = vunpack.c.l.b16 %v244
    %v499 = vunpack.c.h.b16 %v244
    %v500 = vunpack.c.l.b16 %v245
    %v501 = vunpack.c.h.b16 %v245
    %v502 = vunpack.c.l.b16 %v246
    %v503 = vunpack.c.h.b16 %v246
    %v504 = vunpack.c.l.b16 %v247
    %v505 = vunpack.c.h.b16 %v247
    %v506 = vunpack.c.l.b16 %v248
    %v507 = vunpack.c.h.b16 %v248
    %v508 = vunpack.c.l.b16 %v249
    %v509 = vunpack.c.h.b16 %v249
    %v510 = vunpack.c.l.b16 %v250
    %v511 = vunpack.c.h.b16 %v250
    %v512 = vunpack.c.l.b16 %v251
    %v513 = vunpack.c.h.b16 %v251
    %v514 = vunpack.c.l.b16 %v252
    %v515 = vunpack.c.h.b16 %v252
    %v516 = vunpack.c.l.b16 %v253
    %v517 = vunpack.c.h.b16 %v253
    %v518 = vunpack.c.l.b16 %v254
    %v519 = vunpack.c.h.b16 %v254
    %v520 = vunpack.c.l.b16 %v255
    %v521 = vunpack.c.h.b16 %v255
    %v522 = vunpack.c.l.b16 %v256
    %v523 = vunpack.c.h.b16 %v256
    %v524 = vunpack.c.l.b16 %v257
    %v525 = vunpack.c.h.b16 %v257
    %v526 = vunpack.c.l.b16 %v258
    %v527 = vunpack.c.h.b16 %v258
    %v528 = vunpack.c.l.b16 %v259
    %v529 = vunpack.c.h.b16 %v259
    %v530 = vunpack.c.l.b16 %v260
    %v531 = vunpack.c.h.b16 %v260
    %v532 = vunpack.c.l.b16 %v261
    %v533 = vunpack.c.h.b16 %v261
    %v534 = vunpack.c.l.b16 %v262
    %v535 = vunpack.c.h.b16 %v262
    %v536 = vunpack.c.l.b16 %v263
    %v537 = vunpack.c.h.b16 %v263
    %v538 = vunpack.c.l.b16 %v264
    %v539 = vunpack.c.h.b16 %v264
    %v540 = vunpack.c.l.b16 %v265
    %v541 = vunpack.c.h.b16 %v265
    %v542 = vunpack.c.l.b16 %v266
    %v543 = vunpack.c.h.b16 %v266
    %v544 = vunpack.c.l.b16 %v267
    %v545 = vunpack.c.h.b16 %v267
    %v546 = vunpack.c.l.b16 %v268
    %v547 = vunpack.c.h.b16 %v268
    %v548 = vunpack.c.l.b16 %v269
    %v549 = vunpack.c.h.b16 %v269
    %v550 = vunpack.c.l.b16 %v270
    %v551 = vunpack.c.h.b16 %v270
    %v552 = vunpack.c.l.b16 %v271
    %v553 = vunpack.c.h.b16 %v271
    %v554 = vunpack.c.l.b16 %v272
    %v555 = vunpack.c.h.b16 %v272
    %v556 = vunpack.c.l.b16 %v273
    %v557 = vunpack.c.h.b16 %v273
    %v558 = vunpack.c.l.b16 %v274
    %v559 = vunpack.c.h.b16 %v274
    %v560 = vunpack.c.l.b16 %v275
    %v561 = vunpack.c.h.b16 %v275
    %v562 = vunpack.c.l.b16 %v276
    %v563 = vunpack.c.h.b16 %v276
    %v564 = vunpack.c.l.b16 %v277
    %v565 = vunpack.c.h.b16 %v277
    %v566 = vunpack.c.l.b16 %v278
    %v567 = vunpack.c.h.b16 %v278
    %v568 = vunpack.c.l.b16 %v279
    %v569 = vunpack.c.h.b16 %v279
    %v570 = vunpack.c.l.b16 %v280
    %v571 = vunpack.c.h.b16 %v280
    %v572 = vunpack.c.l.b16 %v281
    %v573 = vunpack.c.h.b16 %v281
    %v574 = vunpack.c.l.b16 %v282
    %v575 = vunpack.c.h.b16 %v282
    %v576 = vunpack.c.l.b16 %v283
    %v577 = vunpack.c.h.b16 %v283
    %v578 = vunpack.c.l.b16 %v284
    %v579 = vunpack.c.h.b16 %v284
    %v580 = vunpack.c.l.b16 %v285
    %v581 = vunpack.c.h.b16 %v285
    %v582 = vunpack.c.l.b16 %v286
    %v583 = vunpack.c.h.b16 %v286
    %v584 = vunpack.c.l.b16 %v287
    %v585 = vunpack.c.h.b16 %v287
    %v586 = vunpack.c.l.b16 %v288
    %v587 = vunpack.c.h.b16 %v288
    %v588 = vunpack.c.l.b16 %v289
    %v589 = vunpack.c.h.b16 %v289
    %v590 = vunpack.c.l.b16 %v290
    %v591 = vunpack.c.h.b16 %v290
    %v592 = vunpack.c.l.b16 %v291
    %v593 = vunpack.c.h.b16 %v291
    %v594 = vunpack.c.l.b16 %v292
    %v595 = vunpack.c.h.b16 %v292
    %v596 = vunpack.c.l.b16 %v293
    %v597 = vunpack.c.h.b16 %v293
    %v598 = vunpack.c.l.b16 %v294
    %v599 = vunpack.c.h.b16 %v294
    %v600 = vunpack.c.l.b16 %v295
    %v601 = vunpack.c.h.b16 %v295
    %v602 = vunpack.c.l.b16 %v296
    %v603 = vunpack.c.h.b16 %v296
    %v604 = vunpack.c.l.b16 %v297
    %v605 = vunpack.c.h.b16 %v297
    %v606 = vunpack.c.l.b16 %v298
    %v607 = vunpack.c.h.b16 %v298
    %v608 = vunpack.c.l.b16 %v299
    %v609 = vunpack.c.h.b16 %v299
    %v610 = vunpack.c.l.b16 %v300
    %v611 = vunpack.c.h.b16 %v300
    %v612 = vunpack.c.l.b16 %v301
    %v613 = vunpack.c.h.b16 %v301
    %v614 = vunpack.c.l.b16 %v302
    %v615 = vunpack.c.h.b16 %v302
    %v616 = vunpack.c.l.b16 %v303
    %v617 = vunpack.c.h.b16 %v303
    %v618 = vunpack.c.l.b16 %v304
    %v619 = vunpack.c.h.b16 %v304
    %v620 = vunpack.c.l.b16 %v305
    %v621 = vunpack.c.h.b16 %v305
    %v622 = vpack.c.b16 %v442, %v430
    %v623 = vpack.c.b16 %v443, %v431
    %v624 = vpack.c.b16 %v444, %v432
    %v625 = vpack.c.b16 %v445, %v433
    %v626 = vpack.c.b16 %v446, %v434
    %v627 = vpack.c.b16 %v447, %v435
    %v628 = vpack.c.b16 %v448, %v436
    %v629 = vpack.c.b16 %v449, %v437
    %v630 = vpack.c.b16 %v450, %v438
    %v631 = vpack.c.b16 %v451, %v439
    %v632 = vpack.c.b16 %v452, %v440
    %v633 = vpack.c.b16 %v453, %v441
    %v634 = vpack.c.b16 %v466, %v454
    %v635 = vpack.c.b16 %v467, %v455
    %v636 = vpack.c.b16 %v468, %v456
    %v637 = vpack.c.b16 %v469, %v457
    %v638 = vpack.c.b16 %v470, %v458
    %v639 = vpack.c.b16 %v471, %v459
    %v640 = vpack.c.b16 %v472, %v460
    %v641 = vpack.c.b16 %v473, %v461
    %v642 = vpack.c.b16 %v474, %v462
    %v643 = vpack.c.b16 %v475, %v463
    %v644 = vpack.c.b16 %v476, %v464
    %v645 = vpack.c.b16 %v477, %v465
    %v646 = vpack.c.b16 %v490, %v478
    %v647 = vpack.c.b16 %v491, %v479
    %v648 = vpack.c.b16 %v492, %v480
    %v649 = vpack.c.b16 %v493, %v481
    %v650 = vpack.c.b16 %v494, %v482
    %v651 = vpack.c.b16 %v495, %v483
    %v652 = vpack.c.b16 %v496, %v484
    %v653 = vpack.c.b16 %v497, %v485
    %v654 = vpack.c.b16 %v498, %v486
    %v655 = vpack.c.b16 %v499, %v487
    %v656 = vpack.c.b16 %v500, %v488
    %v657 = vpack.c.b16 %v501, %v489
    %v658 = vpack.c.b16 %v514, %v502
    %v659 = vpack.c.b16 %v515, %v503
    %v660 = vpack.c.b16 %v516, %v504
    %v661 = vpack.c.b16 %v517, %v505
    %v662 = vpack.c.b16 %v518, %v506
    %v663 = vpack.c.b16 %v519, %v507
    %v664 = vpack.c.b16 %v520, %v508
    %v665 = vpack.c.b16 %v521, %v509
    %v666 = vpack.c.b16 %v522, %v510
    %v667 = vpack.c.b16 %v523, %v511
    %v668 = vpack.c.b16 %v524, %v512
    %v669 = vpack.c.b16 %v525, %v513
    %v670 = vpack.c.b16 %v538, %v526
    %v671 = vpack.c.b16 %v539, %v527
    %v672 = vpack.c.b16 %v540, %v528
    %v673 = vpack.c.b16 %v541, %v529
    %v674 = vpack.c.b16 %v542, %v530
    %v675 = vpack.c.b16 %v543, %v531
    %v676 = vpack.c.b16 %v544, %v532
    %v677 = vpack.c.b16 %v545, %v533
    %v678 = vpack.c.b16 %v546, %v534
    %v679 = vpack.c.b16 %v547, %v535
    %v680 = vpack.c.b16 %v548, %v536
    %v681 = vpack.c.b16 %v549, %v537
    %v682 = vpack.c.b16 %v562, %v550
    %v683 = vpack.c.b16 %v563, %v551
    %v684 = vpack.c.b16 %v564, %v552
    %v685 = vpack.c.b16 %v565, %v553
    %v686 = vpack.c.b16 %v566, %v554
    %v687 = vpack.c.b16 %v567, %v555
    %v688 = vpack.c.b16 %v568, %v556
    %v689 = vpack.c.b16 %v569, %v557
    %v690 = vpack.c.b16 %v570, %v558
    %v691 = vpack.c.b16 %v571, %v559
    %v692 = vpack.c.b16 %v572, %v560
    %v693 = vpack.c.b16 %v573, %v561
    %v694 = vpack.c.b16 %v586, %v574
    %v695 = vpack.c.b16 %v587, %v575
    %v696 = vpack.c.b16 %v588, %v576
    %v697 = vpack.c.b16 %v589, %v577
    %v698 = vpack.c.b16 %v590, %v578
    %v699 = vpack.c.b16 %v591, %v579
    %v700 = vpack.c.b16 %v592, %v580
    %v701 = vpack.c.b16 %v593, %v581
    %v702 = vpack.c.b16 %v594, %v582
    %v703 = vpack.c.b16 %v595, %v583
    %v704 = vpack.c.b16 %v596, %v584
    %v705 = vpack.c.b16 %v597, %v585
    %v706 = vpack.c.b16 %v610, %v598
    %v707 = vpack.c.b16 %v611, %v599
    %v708 = vpack.c.b16 %v612, %v600
    %v709 = vpack.c.b16 %v613, %v601
    %v710 = vpack.c.b16 %v614, %v602
    %v711 = vpack.c.b16 %v615, %v603
    %v712 = vpack.c.b16 %v616, %v604
    %v713 = vpack.c.b16 %v617, %v605
    %v714 = vpack.c.b16 %v618, %v606
    %v715 = vpack.c.b16 %v619, %v607
    %v716 = vpack.c.b16 %v620, %v608
    %v717 = vpack.c.b16 %v621, %v609
    %814 = vmatpush.bf16.msra.mxu0 %v706
    %815 = vmatpush.bf16.msra.mxu0 %v694
    %816 = vmatpush.bf16.msra.mxu0 %v682
    %817 = vmatpush.bf16.msra.mxu0 %v670
    %818 = vmatpush.bf16.msra.mxu0 %v658
    %819 = vmatpush.bf16.msra.mxu0 %v646
    %820 = vmatpush.bf16.msra.mxu0 %v634
    %821 = vmatpush.bf16.msra.mxu0 %v622
    %822 = vmatmul.bf16.gmra.mxu0 %v209
    %v823 = vpop.f32.mrf.mxu0
    %v824 = vadd.f32 %v310, %v823
    %v825 = vpop.f32.mrf.mxu0
    %v826 = vadd.f32 %v310, %v825
    %827 = vdwg.mxu0
    %828 = vmatpush.bf16.msra.mxu0 %v707
    %829 = vmatpush.bf16.msra.mxu0 %v695
    %830 = vmatpush.bf16.msra.mxu0 %v683
    %831 = vmatpush.bf16.msra.mxu0 %v671
    %832 = vmatpush.bf16.msra.mxu0 %v659
    %833 = vmatpush.bf16.msra.mxu0 %v647
    %834 = vmatpush.bf16.msra.mxu0 %v635
    %835 = vmatpush.bf16.msra.mxu0 %v623
    %836 = vmatmul.bf16.gmra.mxu0 %v209
    %v837 = vpop.f32.mrf.mxu0
    %v838 = vadd.f32 %v311, %v837
    %v839 = vpop.f32.mrf.mxu0
    %v840 = vadd.f32 %v311, %v839
    %841 = vdwg.mxu0
    %842 = vmatpush.bf16.msra.mxu0 %v708
    %843 = vmatpush.bf16.msra.mxu0 %v696
    %844 = vmatpush.bf16.msra.mxu0 %v684
    %845 = vmatpush.bf16.msra.mxu0 %v672
    %846 = vmatpush.bf16.msra.mxu0 %v660
    %847 = vmatpush.bf16.msra.mxu0 %v648
    %848 = vmatpush.bf16.msra.mxu0 %v636
    %849 = vmatpush.bf16.msra.mxu0 %v624
    %850 = vmatmul.bf16.gmra.mxu0 %v209
    %v851 = vpop.f32.mrf.mxu0
    %v852 = vadd.f32 %v312, %v851
    %v853 = vpop.f32.mrf.mxu0
    %v854 = vadd.f32 %v312, %v853
    %855 = vdwg.mxu0
    %856 = vmatpush.bf16.msra.mxu0 %v709
    %857 = vmatpush.bf16.msra.mxu0 %v697
    %858 = vmatpush.bf16.msra.mxu0 %v685
    %859 = vmatpush.bf16.msra.mxu0 %v673
    %860 = vmatpush.bf16.msra.mxu0 %v661
    %861 = vmatpush.bf16.msra.mxu0 %v649
    %862 = vmatpush.bf16.msra.mxu0 %v637
    %863 = vmatpush.bf16.msra.mxu0 %v625
    %864 = vmatmul.bf16.gmra.mxu0 %v209
    %v865 = vpop.f32.mrf.mxu0
    %v866 = vadd.f32 %v313, %v865
    %v867 = vpop.f32.mrf.mxu0
    %v868 = vadd.f32 %v313, %v867
    %869 = vdwg.mxu0
    %870 = vmatpush.bf16.msra.mxu0 %v710
    %871 = vmatpush.bf16.msra.mxu0 %v698
    %872 = vmatpush.bf16.msra.mxu0 %v686
    %873 = vmatpush.bf16.msra.mxu0 %v674
    %874 = vmatpush.bf16.msra.mxu0 %v662
    %875 = vmatpush.bf16.msra.mxu0 %v650
    %876 = vmatpush.bf16.msra.mxu0 %v638
    %877 = vmatpush.bf16.msra.mxu0 %v626
    %878 = vmatmul.bf16.gmra.mxu0 %v209
    %v879 = vpop.f32.mrf.mxu0
    %v880 = vadd.f32 %v314, %v879
    %v881 = vpop.f32.mrf.mxu0
    %v882 = vadd.f32 %v314, %v881
    %883 = vdwg.mxu0
    %884 = vmatpush.bf16.msra.mxu0 %v711
    %885 = vmatpush.bf16.msra.mxu0 %v699
    %886 = vmatpush.bf16.msra.mxu0 %v687
    %887 = vmatpush.bf16.msra.mxu0 %v675
    %888 = vmatpush.bf16.msra.mxu0 %v663
    %889 = vmatpush.bf16.msra.mxu0 %v651
    %890 = vmatpush.bf16.msra.mxu0 %v639
    %891 = vmatpush.bf16.msra.mxu0 %v627
    %892 = vmatmul.bf16.gmra.mxu0 %v209
    %v893 = vpop.f32.mrf.mxu0
    %v894 = vadd.f32 %v315, %v893
    %v895 = vpop.f32.mrf.mxu0
    %v896 = vadd.f32 %v315, %v895
    %897 = vdwg.mxu0
    %898 = vmatpush.bf16.msra.mxu0 %v712
    %899 = vmatpush.bf16.msra.mxu0 %v700
    %900 = vmatpush.bf16.msra.mxu0 %v688
    %901 = vmatpush.bf16.msra.mxu0 %v676
    %902 = vmatpush.bf16.msra.mxu0 %v664
    %903 = vmatpush.bf16.msra.mxu0 %v652
    %904 = vmatpush.bf16.msra.mxu0 %v640
    %905 = vmatpush.bf16.msra.mxu0 %v628
    %906 = vmatmul.bf16.gmra.mxu0 %v209
    %v907 = vpop.f32.mrf.mxu0
    %v908 = vadd.f32 %v316, %v907
    %v909 = vpop.f32.mrf.mxu0
    %v910 = vadd.f32 %v316, %v909
    %911 = vdwg.mxu0
    %912 = vmatpush.bf16.msra.mxu0 %v713
    %913 = vmatpush.bf16.msra.mxu0 %v701
    %914 = vmatpush.bf16.msra.mxu0 %v689
    %915 = vmatpush.bf16.msra.mxu0 %v677
    %916 = vmatpush.bf16.msra.mxu0 %v665
    %917 = vmatpush.bf16.msra.mxu0 %v653
    %918 = vmatpush.bf16.msra.mxu0 %v641
    %919 = vmatpush.bf16.msra.mxu0 %v629
    %920 = vmatmul.bf16.gmra.mxu0 %v209
    %v921 = vpop.f32.mrf.mxu0
    %v922 = vadd.f32 %v317, %v921
    %v923 = vpop.f32.mrf.mxu0
    %v924 = vadd.f32 %v317, %v923
    %925 = vdwg.mxu0
    %926 = vmatpush.bf16.msra.mxu0 %v714
    %927 = vmatpush.bf16.msra.mxu0 %v702
    %928 = vmatpush.bf16.msra.mxu0 %v690
    %929 = vmatpush.bf16.msra.mxu0 %v678
    %930 = vmatpush.bf16.msra.mxu0 %v666
    %931 = vmatpush.bf16.msra.mxu0 %v654
    %932 = vmatpush.bf16.msra.mxu0 %v642
    %933 = vmatpush.bf16.msra.mxu0 %v630
    %934 = vmatmul.bf16.gmra.mxu0 %v209
    %v935 = vpop.f32.mrf.mxu0
    %v936 = vadd.f32 %v318, %v935
    %v937 = vpop.f32.mrf.mxu0
    %v938 = vadd.f32 %v318, %v937
    %939 = vdwg.mxu0
    %940 = vmatpush.bf16.msra.mxu0 %v715
    %941 = vmatpush.bf16.msra.mxu0 %v703
    %942 = vmatpush.bf16.msra.mxu0 %v691
    %943 = vmatpush.bf16.msra.mxu0 %v679
    %944 = vmatpush.bf16.msra.mxu0 %v667
    %945 = vmatpush.bf16.msra.mxu0 %v655
    %946 = vmatpush.bf16.msra.mxu0 %v643
    %947 = vmatpush.bf16.msra.mxu0 %v631
    %948 = vmatmul.bf16.gmra.mxu0 %v209
    %v949 = vpop.f32.mrf.mxu0
    %v950 = vadd.f32 %v319, %v949
    %v951 = vpop.f32.mrf.mxu0
    %v952 = vadd.f32 %v319, %v951
    %953 = vdwg.mxu0
    %954 = vmatpush.bf16.msra.mxu0 %v716
    %955 = vmatpush.bf16.msra.mxu0 %v704
    %956 = vmatpush.bf16.msra.mxu0 %v692
    %957 = vmatpush.bf16.msra.mxu0 %v680
    %958 = vmatpush.bf16.msra.mxu0 %v668
    %959 = vmatpush.bf16.msra.mxu0 %v656
    %960 = vmatpush.bf16.msra.mxu0 %v644
    %961 = vmatpush.bf16.msra.mxu0 %v632
    %962 = vmatmul.bf16.gmra.mxu0 %v209
    %v963 = vpop.f32.mrf.mxu0
    %v964 = vadd.f32 %v320, %v963
    %v965 = vpop.f32.mrf.mxu0
    %v966 = vadd.f32 %v320, %v965
    %967 = vdwg.mxu0
    %968 = vmatpush.bf16.msra.mxu0 %v717
    %969 = vmatpush.bf16.msra.mxu0 %v705
    %970 = vmatpush.bf16.msra.mxu0 %v693
    %971 = vmatpush.bf16.msra.mxu0 %v681
    %972 = vmatpush.bf16.msra.mxu0 %v669
    %973 = vmatpush.bf16.msra.mxu0 %v657
    %974 = vmatpush.bf16.msra.mxu0 %v645
    %975 = vmatpush.bf16.msra.mxu0 %v633
    %976 = vmatmul.bf16.gmra.mxu0 %v209
    %v977 = vpop.f32.mrf.mxu0
    %v978 = vadd.f32 %v321, %v977
    %v979 = vpop.f32.mrf.mxu0
    %v980 = vadd.f32 %v321, %v979
    %981 = vdwg.mxu0
    %v982 = vpack.c.bf16 %v838, %v824
    %v983 = vpack.c.bf16 %v866, %v852
    %v984 = vpack.c.bf16 %v894, %v880
    %v985 = vpack.c.bf16 %v922, %v908
    %v986 = vpack.c.bf16 %v950, %v936
    %v987 = vpack.c.bf16 %v978, %v964
    %v988 = vpack.c.bf16 %v840, %v826
    %v989 = vpack.c.bf16 %v868, %v854
    %v990 = vpack.c.bf16 %v896, %v882
    %v991 = vpack.c.bf16 %v924, %v910
    %v992 = vpack.c.bf16 %v952, %v938
    %v993 = vpack.c.bf16 %v980, %v966
    %v996 = vrot.slane %v982, 4
    %v997 = vrot.slane %v988, 4
    %v1000 = vrot.slane %v983, 4
    %v1001 = vrot.slane %v989, 4
    %v1004 = vrot.slane %v984, 4
    %v1005 = vrot.slane %v990, 4
    %v1008 = vrot.slane %v985, 4
    %v1009 = vrot.slane %v991, 4
    %v1012 = vrot.slane %v986, 4
    %v1013 = vrot.slane %v992, 4
    %v1016 = vrot.slane %v987, 4
    %v1017 = vrot.slane %v993, 4
    %v1020 = vpack.i.b16 %v996, %v982
    %v1022 = vshrl.u32 %v982, 16
    %v1023 = vshrl.u32 %v996, 16
    %v1024 = vpack.i.b16 %v1023, %v1022
    %v1028 = vpack.i.b16 %v1000, %v983
    %v1030 = vshrl.u32 %v983, 16
    %v1031 = vshrl.u32 %v1000, 16
    %v1032 = vpack.i.b16 %v1031, %v1030
    %v1036 = vpack.i.b16 %v1004, %v984
    %v1038 = vshrl.u32 %v984, 16
    %v1039 = vshrl.u32 %v1004, 16
    %v1040 = vpack.i.b16 %v1039, %v1038
    %v1044 = vpack.i.b16 %v1008, %v985
    %v1046 = vshrl.u32 %v985, 16
    %v1047 = vshrl.u32 %v1008, 16
    %v1048 = vpack.i.b16 %v1047, %v1046
    %v1052 = vpack.i.b16 %v1012, %v986
    %v1053 = vshrl.u32 %v986, 16
    %v1054 = vshrl.u32 %v1012, 16
    %v1055 = vpack.i.b16 %v1054, %v1053
    %v1058 = vpack.i.b16 %v1016, %v987
    %v1059 = vshrl.u32 %v987, 16
    %v1060 = vshrl.u32 %v1016, 16
    %v1061 = vpack.i.b16 %v1060, %v1059
    %v1064 = vpack.i.b16 %v997, %v988
    %v1066 = vshrl.u32 %v988, 16
    %v1067 = vshrl.u32 %v997, 16
    %v1068 = vpack.i.b16 %v1067, %v1066
    %v1072 = vpack.i.b16 %v1001, %v989
    %v1074 = vshrl.u32 %v989, 16
    %v1075 = vshrl.u32 %v1001, 16
    %v1076 = vpack.i.b16 %v1075, %v1074
    %v1080 = vpack.i.b16 %v1005, %v990
    %v1082 = vshrl.u32 %v990, 16
    %v1083 = vshrl.u32 %v1005, 16
    %v1084 = vpack.i.b16 %v1083, %v1082
    %v1088 = vpack.i.b16 %v1009, %v991
    %v1090 = vshrl.u32 %v991, 16
    %v1091 = vshrl.u32 %v1009, 16
    %v1092 = vpack.i.b16 %v1091, %v1090
    %v1096 = vpack.i.b16 %v1013, %v992
    %v1097 = vshrl.u32 %v992, 16
    %v1098 = vshrl.u32 %v1013, 16
    %v1099 = vpack.i.b16 %v1098, %v1097
    %v1102 = vpack.i.b16 %v1017, %v993
    %v1103 = vshrl.u32 %v993, 16
    %v1104 = vshrl.u32 %v1017, 16
    %v1105 = vpack.i.b16 %v1104, %v1103
    %v1106 = vrot.slane %v1036, 4
    %vm1107 = vcmask 1047556
    %v1108 = vsel %vm1107, %v1106, %v1020
    %v1110 = vunpack.c.l.s4 1983009808
    %v1111 = vunpack.c.0.s8 %v1110
    %v1112 = vperm.slane %v1108, %v1111
    %v1113 = vrot.slane %v1044, 4
    %v1114 = vsel %vm1107, %v1113, %v1028
    %v1116 = vunpack.c.l.s4 1983009808
    %v1117 = vunpack.c.0.s8 %v1116
    %v1118 = vperm.slane %v1114, %v1117
    %v1119 = vrot.slane %v1118, 4
    %v1120 = vsel %vm1107, %v1119, %v1112
    %v1121 = vrot.slane %v1112, 4
    %v1122 = vsel %vm1107, %v1118, %v1121
    %v1124 = vunpack.c.l.s4 1934713408
    %v1125 = vunpack.c.0.s8 %v1124
    %v1126 = vperm.slane %v1120, %v1125
    %v1128 = vunpack.c.l.s4 1934713408
    %v1129 = vunpack.c.0.s8 %v1128
    %v1130 = vperm.slane %v1122, %v1129
    %v1131 = vrot.slane %v1126, 4
    %v1132 = vsel %vm1107, 0, %v1131
    %v1133 = vrot.slane %v1130, 4
    %v1134 = vsel %vm1107, 0, %v1133
    %v1135 = vrot.slane %v1040, 4
    %v1136 = vsel %vm1107, %v1135, %v1024
    %v1138 = vunpack.c.l.s4 1983009808
    %v1139 = vunpack.c.0.s8 %v1138
    %v1140 = vperm.slane %v1136, %v1139
    %v1141 = vrot.slane %v1048, 4
    %v1142 = vsel %vm1107, %v1141, %v1032
    %v1144 = vunpack.c.l.s4 1983009808
    %v1145 = vunpack.c.0.s8 %v1144
    %v1146 = vperm.slane %v1142, %v1145
    %v1147 = vrot.slane %v1146, 4
    %v1148 = vsel %vm1107, %v1147, %v1140
    %v1149 = vrot.slane %v1140, 4
    %v1150 = vsel %vm1107, %v1146, %v1149
    %v1152 = vunpack.c.l.s4 1934713408
    %v1153 = vunpack.c.0.s8 %v1152
    %v1154 = vperm.slane %v1148, %v1153
    %v1156 = vunpack.c.l.s4 1934713408
    %v1157 = vunpack.c.0.s8 %v1156
    %v1158 = vperm.slane %v1150, %v1157
    %v1159 = vrot.slane %v1154, 4
    %v1160 = vsel %vm1107, 0, %v1159
    %v1161 = vrot.slane %v1158, 4
    %v1162 = vsel %vm1107, 0, %v1161
    %v1165 = vunpack.c.l.s4 1983009808
    %v1166 = vunpack.c.0.s8 %v1165
    %v1167 = vperm.slane %v1052, %v1166
    %v1170 = vunpack.c.l.s4 1983009808
    %v1171 = vunpack.c.0.s8 %v1170
    %v1172 = vperm.slane %v1058, %v1171
    %v1173 = vrot.slane %v1172, 4
    %v1174 = vsel %vm1107, %v1173, %v1167
    %v1175 = vrot.slane %v1167, 4
    %v1176 = vsel %vm1107, %v1172, %v1175
    %v1178 = vunpack.c.l.s4 1934713408
    %v1179 = vunpack.c.0.s8 %v1178
    %v1180 = vperm.slane %v1174, %v1179
    %v1182 = vunpack.c.l.s4 1934713408
    %v1183 = vunpack.c.0.s8 %v1182
    %v1184 = vperm.slane %v1176, %v1183
    %v1185 = vrot.slane %v1180, 4
    %v1186 = vsel %vm1107, 0, %v1185
    %v1187 = vrot.slane %v1184, 4
    %v1188 = vsel %vm1107, 0, %v1187
    %v1191 = vunpack.c.l.s4 1983009808
    %v1192 = vunpack.c.0.s8 %v1191
    %v1193 = vperm.slane %v1055, %v1192
    %v1196 = vunpack.c.l.s4 1983009808
    %v1197 = vunpack.c.0.s8 %v1196
    %v1198 = vperm.slane %v1061, %v1197
    %v1199 = vrot.slane %v1198, 4
    %v1200 = vsel %vm1107, %v1199, %v1193
    %v1201 = vrot.slane %v1193, 4
    %v1202 = vsel %vm1107, %v1198, %v1201
    %v1204 = vunpack.c.l.s4 1934713408
    %v1205 = vunpack.c.0.s8 %v1204
    %v1206 = vperm.slane %v1200, %v1205
    %v1208 = vunpack.c.l.s4 1934713408
    %v1209 = vunpack.c.0.s8 %v1208
    %v1210 = vperm.slane %v1202, %v1209
    %v1211 = vrot.slane %v1206, 4
    %v1212 = vsel %vm1107, 0, %v1211
    %v1213 = vrot.slane %v1210, 4
    %v1214 = vsel %vm1107, 0, %v1213
    %v1215 = vrot.slane %v1080, 4
    %v1216 = vsel %vm1107, %v1215, %v1064
    %v1218 = vunpack.c.l.s4 1983009808
    %v1219 = vunpack.c.0.s8 %v1218
    %v1220 = vperm.slane %v1216, %v1219
    %v1221 = vrot.slane %v1088, 4
    %v1222 = vsel %vm1107, %v1221, %v1072
    %v1224 = vunpack.c.l.s4 1983009808
    %v1225 = vunpack.c.0.s8 %v1224
    %v1226 = vperm.slane %v1222, %v1225
    %v1227 = vrot.slane %v1226, 4
    %v1228 = vsel %vm1107, %v1227, %v1220
    %v1229 = vrot.slane %v1220, 4
    %v1230 = vsel %vm1107, %v1226, %v1229
    %v1232 = vunpack.c.l.s4 1934713408
    %v1233 = vunpack.c.0.s8 %v1232
    %v1234 = vperm.slane %v1228, %v1233
    %v1236 = vunpack.c.l.s4 1934713408
    %v1237 = vunpack.c.0.s8 %v1236
    %v1238 = vperm.slane %v1230, %v1237
    %v1239 = vrot.slane %v1234, 4
    %v1240 = vsel %vm1107, 0, %v1239
    %v1241 = vrot.slane %v1238, 4
    %v1242 = vsel %vm1107, 0, %v1241
    %v1243 = vrot.slane %v1084, 4
    %v1244 = vsel %vm1107, %v1243, %v1068
    %v1246 = vunpack.c.l.s4 1983009808
    %v1247 = vunpack.c.0.s8 %v1246
    %v1248 = vperm.slane %v1244, %v1247
    %v1249 = vrot.slane %v1092, 4
    %v1250 = vsel %vm1107, %v1249, %v1076
    %v1252 = vunpack.c.l.s4 1983009808
    %v1253 = vunpack.c.0.s8 %v1252
    %v1254 = vperm.slane %v1250, %v1253
    %v1255 = vrot.slane %v1254, 4
    %v1256 = vsel %vm1107, %v1255, %v1248
    %v1257 = vrot.slane %v1248, 4
    %v1258 = vsel %vm1107, %v1254, %v1257
    %v1260 = vunpack.c.l.s4 1934713408
    %v1261 = vunpack.c.0.s8 %v1260
    %v1262 = vperm.slane %v1256, %v1261
    %v1264 = vunpack.c.l.s4 1934713408
    %v1265 = vunpack.c.0.s8 %v1264
    %v1266 = vperm.slane %v1258, %v1265
    %v1267 = vrot.slane %v1262, 4
    %v1268 = vsel %vm1107, 0, %v1267
    %v1269 = vrot.slane %v1266, 4
    %v1270 = vsel %vm1107, 0, %v1269
    %v1273 = vunpack.c.l.s4 1983009808
    %v1274 = vunpack.c.0.s8 %v1273
    %v1275 = vperm.slane %v1096, %v1274
    %v1278 = vunpack.c.l.s4 1983009808
    %v1279 = vunpack.c.0.s8 %v1278
    %v1280 = vperm.slane %v1102, %v1279
    %v1281 = vrot.slane %v1280, 4
    %v1282 = vsel %vm1107, %v1281, %v1275
    %v1283 = vrot.slane %v1275, 4
    %v1284 = vsel %vm1107, %v1280, %v1283
    %v1286 = vunpack.c.l.s4 1934713408
    %v1287 = vunpack.c.0.s8 %v1286
    %v1288 = vperm.slane %v1282, %v1287
    %v1290 = vunpack.c.l.s4 1934713408
    %v1291 = vunpack.c.0.s8 %v1290
    %v1292 = vperm.slane %v1284, %v1291
    %v1293 = vrot.slane %v1288, 4
    %v1294 = vsel %vm1107, 0, %v1293
    %v1295 = vrot.slane %v1292, 4
    %v1296 = vsel %vm1107, 0, %v1295
    %v1299 = vunpack.c.l.s4 1983009808
    %v1300 = vunpack.c.0.s8 %v1299
    %v1301 = vperm.slane %v1099, %v1300
    %v1304 = vunpack.c.l.s4 1983009808
    %v1305 = vunpack.c.0.s8 %v1304
    %v1306 = vperm.slane %v1105, %v1305
    %v1307 = vrot.slane %v1306, 4
    %v1308 = vsel %vm1107, %v1307, %v1301
    %v1309 = vrot.slane %v1301, 4
    %v1310 = vsel %vm1107, %v1306, %v1309
    %v1312 = vunpack.c.l.s4 1934713408
    %v1313 = vunpack.c.0.s8 %v1312
    %v1314 = vperm.slane %v1308, %v1313
    %v1316 = vunpack.c.l.s4 1934713408
    %v1317 = vunpack.c.0.s8 %v1316
    %v1318 = vperm.slane %v1310, %v1317
    %v1319 = vrot.slane %v1314, 4
    %v1320 = vsel %vm1107, 0, %v1319
    %v1321 = vrot.slane %v1318, 4
    %v1322 = vsel %vm1107, 0, %v1321
    %v1323 = vsel %vm1107, %v1133, %v1126
    %v1325 = vunpack.c.l.s4 1983009808
    %v1326 = vunpack.c.0.s8 %v1325
    %v1327 = vperm.slane %v1323, %v1326
    %v1328 = vrot.slane %v1134, 4
    %v1329 = vsel %vm1107, %v1328, %v1132
    %v1331 = vunpack.c.l.s4 1983009808
    %v1332 = vunpack.c.0.s8 %v1331
    %v1333 = vperm.slane %v1329, %v1332
    %v1334 = vrot.slane %v1333, 4
    %v1335 = vsel %vm1107, %v1334, %v1327
    %v1336 = vrot.slane %v1327, 4
    %v1337 = vsel %vm1107, %v1333, %v1336
    %v1339 = vunpack.c.l.s4 1934713408
    %v1340 = vunpack.c.0.s8 %v1339
    %v1341 = vperm.slane %v1335, %v1340
    %v1343 = vunpack.c.l.s4 1934713408
    %v1344 = vunpack.c.0.s8 %v1343
    %v1345 = vperm.slane %v1337, %v1344
    %v1346 = vrot.slane %v1341, 4
    %v1347 = vsel %vm1107, 0, %v1346
    %v1348 = vrot.slane %v1345, 4
    %v1349 = vsel %vm1107, 0, %v1348
    %v1350 = vsel %vm1107, %v1161, %v1154
    %v1352 = vunpack.c.l.s4 1983009808
    %v1353 = vunpack.c.0.s8 %v1352
    %v1354 = vperm.slane %v1350, %v1353
    %v1355 = vrot.slane %v1162, 4
    %v1356 = vsel %vm1107, %v1355, %v1160
    %v1358 = vunpack.c.l.s4 1983009808
    %v1359 = vunpack.c.0.s8 %v1358
    %v1360 = vperm.slane %v1356, %v1359
    %v1361 = vrot.slane %v1360, 4
    %v1362 = vsel %vm1107, %v1361, %v1354
    %v1363 = vrot.slane %v1354, 4
    %v1364 = vsel %vm1107, %v1360, %v1363
    %v1366 = vunpack.c.l.s4 1934713408
    %v1367 = vunpack.c.0.s8 %v1366
    %v1368 = vperm.slane %v1362, %v1367
    %v1370 = vunpack.c.l.s4 1934713408
    %v1371 = vunpack.c.0.s8 %v1370
    %v1372 = vperm.slane %v1364, %v1371
    %v1373 = vrot.slane %v1368, 4
    %v1374 = vsel %vm1107, 0, %v1373
    %v1375 = vrot.slane %v1372, 4
    %v1376 = vsel %vm1107, 0, %v1375
    %v1377 = vsel %vm1107, %v1187, %v1180
    %v1379 = vunpack.c.l.s4 1983009808
    %v1380 = vunpack.c.0.s8 %v1379
    %v1381 = vperm.slane %v1377, %v1380
    %v1382 = vrot.slane %v1188, 4
    %v1383 = vsel %vm1107, %v1382, %v1186
    %v1385 = vunpack.c.l.s4 1983009808
    %v1386 = vunpack.c.0.s8 %v1385
    %v1387 = vperm.slane %v1383, %v1386
    %v1388 = vrot.slane %v1387, 4
    %v1389 = vsel %vm1107, %v1388, %v1381
    %v1391 = vunpack.c.l.s4 1934713408
    %v1392 = vunpack.c.0.s8 %v1391
    %v1393 = vperm.slane %v1389, %v1392
    %v1394 = vrot.slane %v1393, 4
    %v1395 = vsel %vm1107, 0, %v1394
    %v1396 = vsel %vm1107, %v1213, %v1206
    %v1398 = vunpack.c.l.s4 1983009808
    %v1399 = vunpack.c.0.s8 %v1398
    %v1400 = vperm.slane %v1396, %v1399
    %v1401 = vrot.slane %v1214, 4
    %v1402 = vsel %vm1107, %v1401, %v1212
    %v1404 = vunpack.c.l.s4 1983009808
    %v1405 = vunpack.c.0.s8 %v1404
    %v1406 = vperm.slane %v1402, %v1405
    %v1407 = vrot.slane %v1406, 4
    %v1408 = vsel %vm1107, %v1407, %v1400
    %v1410 = vunpack.c.l.s4 1934713408
    %v1411 = vunpack.c.0.s8 %v1410
    %v1412 = vperm.slane %v1408, %v1411
    %v1413 = vrot.slane %v1412, 4
    %v1414 = vsel %vm1107, 0, %v1413
    %v1415 = vsel %vm1107, %v1241, %v1234
    %v1417 = vunpack.c.l.s4 1983009808
    %v1418 = vunpack.c.0.s8 %v1417
    %v1419 = vperm.slane %v1415, %v1418
    %v1420 = vrot.slane %v1242, 4
    %v1421 = vsel %vm1107, %v1420, %v1240
    %v1423 = vunpack.c.l.s4 1983009808
    %v1424 = vunpack.c.0.s8 %v1423
    %v1425 = vperm.slane %v1421, %v1424
    %v1426 = vrot.slane %v1425, 4
    %v1427 = vsel %vm1107, %v1426, %v1419
    %v1428 = vrot.slane %v1419, 4
    %v1429 = vsel %vm1107, %v1425, %v1428
    %v1431 = vunpack.c.l.s4 1934713408
    %v1432 = vunpack.c.0.s8 %v1431
    %v1433 = vperm.slane %v1427, %v1432
    %v1435 = vunpack.c.l.s4 1934713408
    %v1436 = vunpack.c.0.s8 %v1435
    %v1437 = vperm.slane %v1429, %v1436
    %v1438 = vrot.slane %v1433, 4
    %v1439 = vsel %vm1107, 0, %v1438
    %v1440 = vrot.slane %v1437, 4
    %v1441 = vsel %vm1107, 0, %v1440
    %v1442 = vsel %vm1107, %v1269, %v1262
    %v1444 = vunpack.c.l.s4 1983009808
    %v1445 = vunpack.c.0.s8 %v1444
    %v1446 = vperm.slane %v1442, %v1445
    %v1447 = vrot.slane %v1270, 4
    %v1448 = vsel %vm1107, %v1447, %v1268
    %v1450 = vunpack.c.l.s4 1983009808
    %v1451 = vunpack.c.0.s8 %v1450
    %v1452 = vperm.slane %v1448, %v1451
    %v1453 = vrot.slane %v1452, 4
    %v1454 = vsel %vm1107, %v1453, %v1446
    %v1455 = vrot.slane %v1446, 4
    %v1456 = vsel %vm1107, %v1452, %v1455
    %v1458 = vunpack.c.l.s4 1934713408
    %v1459 = vunpack.c.0.s8 %v1458
    %v1460 = vperm.slane %v1454, %v1459
    %v1462 = vunpack.c.l.s4 1934713408
    %v1463 = vunpack.c.0.s8 %v1462
    %v1464 = vperm.slane %v1456, %v1463
    %v1465 = vrot.slane %v1460, 4
    %v1466 = vsel %vm1107, 0, %v1465
    %v1467 = vrot.slane %v1464, 4
    %v1468 = vsel %vm1107, 0, %v1467
    %v1469 = vsel %vm1107, %v1295, %v1288
    %v1471 = vunpack.c.l.s4 1983009808
    %v1472 = vunpack.c.0.s8 %v1471
    %v1473 = vperm.slane %v1469, %v1472
    %v1474 = vrot.slane %v1296, 4
    %v1475 = vsel %vm1107, %v1474, %v1294
    %v1477 = vunpack.c.l.s4 1983009808
    %v1478 = vunpack.c.0.s8 %v1477
    %v1479 = vperm.slane %v1475, %v1478
    %v1480 = vrot.slane %v1479, 4
    %v1481 = vsel %vm1107, %v1480, %v1473
    %v1483 = vunpack.c.l.s4 1934713408
    %v1484 = vunpack.c.0.s8 %v1483
    %v1485 = vperm.slane %v1481, %v1484
    %v1486 = vrot.slane %v1485, 4
    %v1487 = vsel %vm1107, 0, %v1486
    %v1488 = vsel %vm1107, %v1321, %v1314
    %v1490 = vunpack.c.l.s4 1983009808
    %v1491 = vunpack.c.0.s8 %v1490
    %v1492 = vperm.slane %v1488, %v1491
    %v1493 = vrot.slane %v1322, 4
    %v1494 = vsel %vm1107, %v1493, %v1320
    %v1496 = vunpack.c.l.s4 1983009808
    %v1497 = vunpack.c.0.s8 %v1496
    %v1498 = vperm.slane %v1494, %v1497
    %v1499 = vrot.slane %v1498, 4
    %v1500 = vsel %vm1107, %v1499, %v1492
    %v1502 = vunpack.c.l.s4 1934713408
    %v1503 = vunpack.c.0.s8 %v1502
    %v1504 = vperm.slane %v1500, %v1503
    %v1505 = vrot.slane %v1504, 4
    %v1506 = vsel %vm1107, 0, %v1505
    %v1509 = vpack.i.b16 %v1368, %v1341
    %v1511 = vshrl.u32 %v1341, 16
    %v1512 = vshrl.u32 %v1368, 16
    %v1513 = vpack.i.b16 %v1512, %v1511
    %v1517 = vpack.i.b16 %v1374, %v1347
    %v1519 = vshrl.u32 %v1347, 16
    %v1520 = vshrl.u32 %v1374, 16
    %v1521 = vpack.i.b16 %v1520, %v1519
    %v1525 = vpack.i.b16 %v1372, %v1345
    %v1527 = vshrl.u32 %v1345, 16
    %v1528 = vshrl.u32 %v1372, 16
    %v1529 = vpack.i.b16 %v1528, %v1527
    %v1533 = vpack.i.b16 %v1376, %v1349
    %v1535 = vshrl.u32 %v1349, 16
    %v1536 = vshrl.u32 %v1376, 16
    %v1537 = vpack.i.b16 %v1536, %v1535
    %v1541 = vpack.i.b16 %v1412, %v1393
    %v1542 = vshrl.u32 %v1393, 16
    %v1543 = vshrl.u32 %v1412, 16
    %v1544 = vpack.i.b16 %v1543, %v1542
    %v1547 = vpack.i.b16 %v1414, %v1395
    %v1548 = vshrl.u32 %v1395, 16
    %v1549 = vshrl.u32 %v1414, 16
    %v1550 = vpack.i.b16 %v1549, %v1548
    %v1553 = vpack.i.b16 %v1460, %v1433
    %v1555 = vshrl.u32 %v1433, 16
    %v1556 = vshrl.u32 %v1460, 16
    %v1557 = vpack.i.b16 %v1556, %v1555
    %v1561 = vpack.i.b16 %v1466, %v1439
    %v1563 = vshrl.u32 %v1439, 16
    %v1564 = vshrl.u32 %v1466, 16
    %v1565 = vpack.i.b16 %v1564, %v1563
    %v1569 = vpack.i.b16 %v1464, %v1437
    %v1571 = vshrl.u32 %v1437, 16
    %v1572 = vshrl.u32 %v1464, 16
    %v1573 = vpack.i.b16 %v1572, %v1571
    %v1577 = vpack.i.b16 %v1468, %v1441
    %v1579 = vshrl.u32 %v1441, 16
    %v1580 = vshrl.u32 %v1468, 16
    %v1581 = vpack.i.b16 %v1580, %v1579
    %v1585 = vpack.i.b16 %v1504, %v1485
    %v1586 = vshrl.u32 %v1485, 16
    %v1587 = vshrl.u32 %v1504, 16
    %v1588 = vpack.i.b16 %v1587, %v1586
    %v1591 = vpack.i.b16 %v1506, %v1487
    %v1592 = vshrl.u32 %v1487, 16
    %v1593 = vshrl.u32 %v1506, 16
    %v1594 = vpack.i.b16 %v1593, %v1592
    %1595 = vmatpush.bf16.xpose.msra.mxu0 0
    %1596 = vmatpush.bf16.xpose.msra.mxu0 0
    %1597 = vmatpush.bf16.xpose.msra.mxu0 0
    %1598 = vmatpush.bf16.xpose.msra.mxu0 0
    %1599 = vmatpush.bf16.xpose.msra.mxu0 0
    %1600 = vmatpush.bf16.xpose.msra.mxu0 0
    %1601 = vmatpush.bf16.xpose.msra.mxu0 0
    %1602 = vmatpush.bf16.xpose.msra.mxu0 %v1525
    %1603 = vmatmul.bf16.gmra.mxu0 %v1509
    %v1604 = vpop.f32.mrf.mxu0
    %v1605 = vadd.f32 0.0, %v1604
    %v1606 = vpop.f32.mrf.mxu0
    %1607 = vdwg.mxu0
    %1608 = vmatpush.bf16.xpose.msra.mxu0 0
    %1609 = vmatpush.bf16.xpose.msra.mxu0 0
    %1610 = vmatpush.bf16.xpose.msra.mxu0 0
    %1611 = vmatpush.bf16.xpose.msra.mxu0 0
    %1612 = vmatpush.bf16.xpose.msra.mxu0 0
    %1613 = vmatpush.bf16.xpose.msra.mxu0 0
    %1614 = vmatpush.bf16.xpose.msra.mxu0 0
    %1615 = vmatpush.bf16.xpose.msra.mxu0 %v1529
    %1616 = vmatmul.bf16.gmra.mxu0 %v1513
    %v1617 = vpop.f32.mrf.mxu0
    %v1618 = vadd.f32 0.0, %v1617
    %v1619 = vpop.f32.mrf.mxu0
    %1620 = vdwg.mxu0
    %1621 = vmatpush.bf16.xpose.msra.mxu0 0
    %1622 = vmatpush.bf16.xpose.msra.mxu0 0
    %1623 = vmatpush.bf16.xpose.msra.mxu0 0
    %1624 = vmatpush.bf16.xpose.msra.mxu0 0
    %1625 = vmatpush.bf16.xpose.msra.mxu0 0
    %1626 = vmatpush.bf16.xpose.msra.mxu0 0
    %1627 = vmatpush.bf16.xpose.msra.mxu0 0
    %1628 = vmatpush.bf16.xpose.msra.mxu0 %v1533
    %1629 = vmatmul.bf16.gmra.mxu0 %v1517
    %v1630 = vpop.f32.mrf.mxu0
    %v1631 = vadd.f32 0.0, %v1630
    %v1632 = vpop.f32.mrf.mxu0
    %1633 = vdwg.mxu0
    %1634 = vmatpush.bf16.xpose.msra.mxu0 0
    %1635 = vmatpush.bf16.xpose.msra.mxu0 0
    %1636 = vmatpush.bf16.xpose.msra.mxu0 0
    %1637 = vmatpush.bf16.xpose.msra.mxu0 0
    %1638 = vmatpush.bf16.xpose.msra.mxu0 0
    %1639 = vmatpush.bf16.xpose.msra.mxu0 0
    %1640 = vmatpush.bf16.xpose.msra.mxu0 0
    %1641 = vmatpush.bf16.xpose.msra.mxu0 %v1537
    %1642 = vmatmul.bf16.gmra.mxu0 %v1521
    %v1643 = vpop.f32.mrf.mxu0
    %v1644 = vadd.f32 0.0, %v1643
    %v1645 = vpop.f32.mrf.mxu0
    %1646 = vdwg.mxu0
    %1647 = vmatpush.bf16.xpose.msra.mxu0 0
    %1648 = vmatpush.bf16.xpose.msra.mxu0 0
    %1649 = vmatpush.bf16.xpose.msra.mxu0 0
    %1650 = vmatpush.bf16.xpose.msra.mxu0 0
    %1651 = vmatpush.bf16.xpose.msra.mxu0 0
    %1652 = vmatpush.bf16.xpose.msra.mxu0 0
    %1653 = vmatpush.bf16.xpose.msra.mxu0 0
    %1654 = vmatpush.bf16.xpose.msra.mxu0 %v1569
    %1655 = vmatmul.bf16.gmra.mxu0 %v1553
    %v1656 = vpop.f32.mrf.mxu0
    %v1657 = vadd.f32 0.0, %v1656
    %v1658 = vpop.f32.mrf.mxu0
    %1659 = vdwg.mxu0
    %1660 = vmatpush.bf16.xpose.msra.mxu0 0
    %1661 = vmatpush.bf16.xpose.msra.mxu0 0
    %1662 = vmatpush.bf16.xpose.msra.mxu0 0
    %1663 = vmatpush.bf16.xpose.msra.mxu0 0
    %1664 = vmatpush.bf16.xpose.msra.mxu0 0
    %1665 = vmatpush.bf16.xpose.msra.mxu0 0
    %1666 = vmatpush.bf16.xpose.msra.mxu0 0
    %1667 = vmatpush.bf16.xpose.msra.mxu0 %v1573
    %1668 = vmatmul.bf16.gmra.mxu0 %v1557
    %v1669 = vpop.f32.mrf.mxu0
    %v1670 = vadd.f32 0.0, %v1669
    %v1671 = vpop.f32.mrf.mxu0
    %1672 = vdwg.mxu0
    %1673 = vmatpush.bf16.xpose.msra.mxu0 0
    %1674 = vmatpush.bf16.xpose.msra.mxu0 0
    %1675 = vmatpush.bf16.xpose.msra.mxu0 0
    %1676 = vmatpush.bf16.xpose.msra.mxu0 0
    %1677 = vmatpush.bf16.xpose.msra.mxu0 0
    %1678 = vmatpush.bf16.xpose.msra.mxu0 0
    %1679 = vmatpush.bf16.xpose.msra.mxu0 0
    %1680 = vmatpush.bf16.xpose.msra.mxu0 %v1577
    %1681 = vmatmul.bf16.gmra.mxu0 %v1561
    %v1682 = vpop.f32.mrf.mxu0
    %v1683 = vadd.f32 0.0, %v1682
    %v1684 = vpop.f32.mrf.mxu0
    %1685 = vdwg.mxu0
    %1686 = vmatpush.bf16.xpose.msra.mxu0 0
    %1687 = vmatpush.bf16.xpose.msra.mxu0 0
    %1688 = vmatpush.bf16.xpose.msra.mxu0 0
    %1689 = vmatpush.bf16.xpose.msra.mxu0 0
    %1690 = vmatpush.bf16.xpose.msra.mxu0 0
    %1691 = vmatpush.bf16.xpose.msra.mxu0 0
    %1692 = vmatpush.bf16.xpose.msra.mxu0 0
    %1693 = vmatpush.bf16.xpose.msra.mxu0 %v1581
    %1694 = vmatmul.bf16.gmra.mxu0 %v1565
    %v1695 = vpop.f32.mrf.mxu0
    %v1696 = vadd.f32 0.0, %v1695
    %v1697 = vpop.f32.mrf.mxu0
    %1698 = vdwg.mxu0
    %vm1699 = vcmask 64512
    %v1700 = vsel %vm1699, %v1605, -inf
    %1701 = vmax.xlane.f32.xlu0 %v1700
    %v1702 = vpop.xlane.xlu0 %1701
    %v1703 = vsel %vm1699, %v1618, -inf
    %1704 = vmax.xlane.f32.xlu0 %v1703
    %v1705 = vpop.xlane.xlu0 %1704
    %v1706 = vsel %vm1699, %v1631, -inf
    %1707 = vmax.xlane.f32.xlu0 %v1706
    %v1708 = vpop.xlane.xlu0 %1707
    %v1709 = vsel %vm1699, %v1644, -inf
    %1710 = vmax.xlane.f32.xlu0 %v1709
    %v1711 = vpop.xlane.xlu0 %1710
    %v1712 = vsel %vm1699, %v1657, -inf
    %1713 = vmax.xlane.f32.xlu0 %v1712
    %v1714 = vpop.xlane.xlu0 %1713
    %v1715 = vsel %vm1699, %v1670, -inf
    %1716 = vmax.xlane.f32.xlu0 %v1715
    %v1717 = vpop.xlane.xlu0 %1716
    %v1718 = vsel %vm1699, %v1683, -inf
    %1719 = vmax.xlane.f32.xlu0 %v1718
    %v1720 = vpop.xlane.xlu0 %1719
    %v1721 = vsel %vm1699, %v1696, -inf
    %1722 = vmax.xlane.f32.xlu0 %v1721
    %v1723 = vpop.xlane.xlu0 %1722
    %v1724 = vsub.f32 %v1605, %v1702
    %v1725 = vsub.f32 %v1618, %v1705
    %v1726 = vsub.f32 %v1631, %v1708
    %v1727 = vsub.f32 %v1644, %v1711
    %v1728 = vsub.f32 %v1657, %v1714
    %v1729 = vsub.f32 %v1670, %v1717
    %v1730 = vsub.f32 %v1683, %v1720
    %v1731 = vsub.f32 %v1696, %v1723
    %v1732 = vmul.f32 %v1724, 1.442695
    %v1733 = vpow.pop %v1732
    %v1734 = vmul.f32 %v1725, 1.442695
    %v1735 = vpow.pop %v1734
    %v1736 = vmul.f32 %v1726, 1.442695
    %v1737 = vpow.pop %v1736
    %v1738 = vmul.f32 %v1727, 1.442695
    %v1739 = vpow.pop %v1738
    %v1740 = vmul.f32 %v1728, 1.442695
    %v1741 = vpow.pop %v1740
    %v1742 = vmul.f32 %v1729, 1.442695
    %v1743 = vpow.pop %v1742
    %v1744 = vmul.f32 %v1730, 1.442695
    %v1745 = vpow.pop %v1744
    %v1746 = vmul.f32 %v1731, 1.442695
    %v1747 = vpow.pop %v1746
    %v1748 = vsel %vm1699, %v1733, 0.0
    %1749 = vadd.xlane.f32.xlu0 %v1748
    %v1750 = vpop.xlane.xlu0 %1749
    %v1751 = vsel %vm1699, %v1735, 0.0
    %1752 = vadd.xlane.f32.xlu0 %v1751
    %v1753 = vpop.xlane.xlu0 %1752
    %v1754 = vsel %vm1699, %v1737, 0.0
    %1755 = vadd.xlane.f32.xlu0 %v1754
    %v1756 = vpop.xlane.xlu0 %1755
    %v1757 = vsel %vm1699, %v1739, 0.0
    %1758 = vadd.xlane.f32.xlu0 %v1757
    %v1759 = vpop.xlane.xlu0 %1758
    %v1760 = vsel %vm1699, %v1741, 0.0
    %1761 = vadd.xlane.f32.xlu0 %v1760
    %v1762 = vpop.xlane.xlu0 %1761
    %v1763 = vsel %vm1699, %v1743, 0.0
    %1764 = vadd.xlane.f32.xlu0 %v1763
    %v1765 = vpop.xlane.xlu0 %1764
    %v1766 = vsel %vm1699, %v1745, 0.0
    %1767 = vadd.xlane.f32.xlu0 %v1766
    %v1768 = vpop.xlane.xlu0 %1767
    %v1769 = vsel %vm1699, %v1747, 0.0
    %1770 = vadd.xlane.f32.xlu0 %v1769
    %v1771 = vpop.xlane.xlu0 %1770
    %v1772 = vrcp.pop %v1750
    %v1773 = vrcp.pop %v1753
    %v1774 = vrcp.pop %v1756
    %v1775 = vrcp.pop %v1759
    %v1776 = vrcp.pop %v1762
    %v1777 = vrcp.pop %v1765
    %v1778 = vrcp.pop %v1768
    %v1779 = vrcp.pop %v1771
    %v1780 = vmul.f32 %v1733, %v1772
    %v1781 = vmul.f32 %v1735, %v1773
    %v1782 = vmul.f32 %v1737, %v1774
    %v1783 = vmul.f32 %v1739, %v1775
    %v1784 = vmul.f32 %v1741, %v1776
    %v1785 = vmul.f32 %v1743, %v1777
    %v1786 = vmul.f32 %v1745, %v1778
    %v1787 = vmul.f32 %v1747, %v1779
    %v1788 = vpack.c.bf16 %v1780, %v1780
    %v1789 = vpack.c.bf16 %v1781, %v1781
    %v1790 = vpack.c.bf16 %v1782, %v1782
    %v1791 = vpack.c.bf16 %v1783, %v1783
    %v1792 = vpack.c.bf16 %v1784, %v1784
    %v1793 = vpack.c.bf16 %v1785, %v1785
    %v1794 = vpack.c.bf16 %v1786, %v1786
    %v1795 = vpack.c.bf16 %v1787, %v1787
    %v1797 = vsel %vm1699, %v1788, 0
    %vm1799 = vcmask 1043456
    %v1801 = vsel %vm1799, %v1541, 0
    %1803 = vmatpush.bf16.msra.mxu0 0
    %1804 = vmatpush.bf16.msra.mxu0 0
    %1805 = vmatpush.bf16.msra.mxu0 0
    %1806 = vmatpush.bf16.msra.mxu0 0
    %1807 = vmatpush.bf16.msra.mxu0 0
    %1808 = vmatpush.bf16.msra.mxu0 0
    %1809 = vmatpush.bf16.msra.mxu0 0
    %1810 = vmatpush.bf16.msra.mxu0 %v1801
    %1811 = vmatmul.bf16.gmra.mxu0 %v1797
    %v1812 = vpop.f32.mrf.mxu0
    %v1813 = vadd.f32 0.0, %v1812
    %v1814 = vpop.f32.mrf.mxu0
    %1815 = vdwg.mxu0
    %v1817 = vsel %vm1699, %v1789, 0
    %v1820 = vsel %vm1799, %v1544, 0
    %1822 = vmatpush.bf16.msra.mxu0 0
    %1823 = vmatpush.bf16.msra.mxu0 0
    %1824 = vmatpush.bf16.msra.mxu0 0
    %1825 = vmatpush.bf16.msra.mxu0 0
    %1826 = vmatpush.bf16.msra.mxu0 0
    %1827 = vmatpush.bf16.msra.mxu0 0
    %1828 = vmatpush.bf16.msra.mxu0 0
    %1829 = vmatpush.bf16.msra.mxu0 %v1820
    %1830 = vmatmul.bf16.gmra.mxu0 %v1817
    %v1831 = vpop.f32.mrf.mxu0
    %v1832 = vadd.f32 0.0, %v1831
    %v1833 = vpop.f32.mrf.mxu0
    %1834 = vdwg.mxu0
    %v1836 = vsel %vm1699, %v1790, 0
    %v1839 = vsel %vm1799, %v1547, 0
    %1841 = vmatpush.bf16.msra.mxu0 0
    %1842 = vmatpush.bf16.msra.mxu0 0
    %1843 = vmatpush.bf16.msra.mxu0 0
    %1844 = vmatpush.bf16.msra.mxu0 0
    %1845 = vmatpush.bf16.msra.mxu0 0
    %1846 = vmatpush.bf16.msra.mxu0 0
    %1847 = vmatpush.bf16.msra.mxu0 0
    %1848 = vmatpush.bf16.msra.mxu0 %v1839
    %1849 = vmatmul.bf16.gmra.mxu0 %v1836
    %v1850 = vpop.f32.mrf.mxu0
    %v1851 = vadd.f32 0.0, %v1850
    %v1852 = vpop.f32.mrf.mxu0
    %1853 = vdwg.mxu0
    %v1855 = vsel %vm1699, %v1791, 0
    %v1858 = vsel %vm1799, %v1550, 0
    %1860 = vmatpush.bf16.msra.mxu0 0
    %1861 = vmatpush.bf16.msra.mxu0 0
    %1862 = vmatpush.bf16.msra.mxu0 0
    %1863 = vmatpush.bf16.msra.mxu0 0
    %1864 = vmatpush.bf16.msra.mxu0 0
    %1865 = vmatpush.bf16.msra.mxu0 0
    %1866 = vmatpush.bf16.msra.mxu0 0
    %1867 = vmatpush.bf16.msra.mxu0 %v1858
    %1868 = vmatmul.bf16.gmra.mxu0 %v1855
    %v1869 = vpop.f32.mrf.mxu0
    %v1870 = vadd.f32 0.0, %v1869
    %v1871 = vpop.f32.mrf.mxu0
    %1872 = vdwg.mxu0
    %v1874 = vsel %vm1699, %v1792, 0
    %v1877 = vsel %vm1799, %v1585, 0
    %1879 = vmatpush.bf16.msra.mxu0 0
    %1880 = vmatpush.bf16.msra.mxu0 0
    %1881 = vmatpush.bf16.msra.mxu0 0
    %1882 = vmatpush.bf16.msra.mxu0 0
    %1883 = vmatpush.bf16.msra.mxu0 0
    %1884 = vmatpush.bf16.msra.mxu0 0
    %1885 = vmatpush.bf16.msra.mxu0 0
    %1886 = vmatpush.bf16.msra.mxu0 %v1877
    %1887 = vmatmul.bf16.gmra.mxu0 %v1874
    %v1888 = vpop.f32.mrf.mxu0
    %v1889 = vadd.f32 0.0, %v1888
    %v1890 = vpop.f32.mrf.mxu0
    %1891 = vdwg.mxu0
    %v1893 = vsel %vm1699, %v1793, 0
    %v1896 = vsel %vm1799, %v1588, 0
    %1898 = vmatpush.bf16.msra.mxu0 0
    %1899 = vmatpush.bf16.msra.mxu0 0
    %1900 = vmatpush.bf16.msra.mxu0 0
    %1901 = vmatpush.bf16.msra.mxu0 0
    %1902 = vmatpush.bf16.msra.mxu0 0
    %1903 = vmatpush.bf16.msra.mxu0 0
    %1904 = vmatpush.bf16.msra.mxu0 0
    %1905 = vmatpush.bf16.msra.mxu0 %v1896
    %1906 = vmatmul.bf16.gmra.mxu0 %v1893
    %v1907 = vpop.f32.mrf.mxu0
    %v1908 = vadd.f32 0.0, %v1907
    %v1909 = vpop.f32.mrf.mxu0
    %1910 = vdwg.mxu0
    %v1912 = vsel %vm1699, %v1794, 0
    %v1915 = vsel %vm1799, %v1591, 0
    %1917 = vmatpush.bf16.msra.mxu0 0
    %1918 = vmatpush.bf16.msra.mxu0 0
    %1919 = vmatpush.bf16.msra.mxu0 0
    %1920 = vmatpush.bf16.msra.mxu0 0
    %1921 = vmatpush.bf16.msra.mxu0 0
    %1922 = vmatpush.bf16.msra.mxu0 0
    %1923 = vmatpush.bf16.msra.mxu0 0
    %1924 = vmatpush.bf16.msra.mxu0 %v1915
    %1925 = vmatmul.bf16.gmra.mxu0 %v1912
    %v1926 = vpop.f32.mrf.mxu0
    %v1927 = vadd.f32 0.0, %v1926
    %v1928 = vpop.f32.mrf.mxu0
    %1929 = vdwg.mxu0
    %v1931 = vsel %vm1699, %v1795, 0
    %v1934 = vsel %vm1799, %v1594, 0
    %1936 = vmatpush.bf16.msra.mxu0 0
    %1937 = vmatpush.bf16.msra.mxu0 0
    %1938 = vmatpush.bf16.msra.mxu0 0
    %1939 = vmatpush.bf16.msra.mxu0 0
    %1940 = vmatpush.bf16.msra.mxu0 0
    %1941 = vmatpush.bf16.msra.mxu0 0
    %1942 = vmatpush.bf16.msra.mxu0 0
    %1943 = vmatpush.bf16.msra.mxu0 %v1934
    %1944 = vmatmul.bf16.gmra.mxu0 %v1931
    %v1945 = vpop.f32.mrf.mxu0
    %v1946 = vadd.f32 0.0, %v1945
    %v1947 = vpop.f32.mrf.mxu0
    %1948 = vdwg.mxu0
    %v1949 = vrot.slane %v1851, 4
    %vm1950 = vcmask 1047556
    %v1951 = vsel %vm1950, %v1949, %v1813
    %v1952 = vrot.slane %v1813, 4
    %v1953 = vsel %vm1950, %v1851, %v1952
    %v1955 = vunpack.c.l.s4 1983009808
    %v1956 = vunpack.c.0.s8 %v1955
    %v1957 = vperm.slane %v1951, %v1956
    %v1959 = vunpack.c.l.s4 1983009808
    %v1960 = vunpack.c.0.s8 %v1959
    %v1961 = vperm.slane %v1953, %v1960
    %v1962 = vrot.slane %v1870, 4
    %v1963 = vsel %vm1950, %v1962, %v1832
    %v1964 = vrot.slane %v1832, 4
    %v1965 = vsel %vm1950, %v1870, %v1964
    %v1967 = vunpack.c.l.s4 1983009808
    %v1968 = vunpack.c.0.s8 %v1967
    %v1969 = vperm.slane %v1963, %v1968
    %v1971 = vunpack.c.l.s4 1983009808
    %v1972 = vunpack.c.0.s8 %v1971
    %v1973 = vperm.slane %v1965, %v1972
    %v1974 = vrot.slane %v1969, 4
    %v1975 = vsel %vm1950, %v1974, %v1957
    %v1976 = vrot.slane %v1957, 4
    %v1977 = vsel %vm1950, %v1969, %v1976
    %v1979 = vunpack.c.l.s4 1934713408
    %v1980 = vunpack.c.0.s8 %v1979
    %v1981 = vperm.slane %v1975, %v1980
    %v1983 = vunpack.c.l.s4 1934713408
    %v1984 = vunpack.c.0.s8 %v1983
    %v1985 = vperm.slane %v1977, %v1984
    %v1986 = vrot.slane %v1973, 4
    %v1987 = vsel %vm1950, %v1986, %v1961
    %v1988 = vrot.slane %v1961, 4
    %v1989 = vsel %vm1950, %v1973, %v1988
    %v1991 = vunpack.c.l.s4 1934713408
    %v1992 = vunpack.c.0.s8 %v1991
    %v1993 = vperm.slane %v1987, %v1992
    %v1995 = vunpack.c.l.s4 1934713408
    %v1996 = vunpack.c.0.s8 %v1995
    %v1997 = vperm.slane %v1989, %v1996
    %v1998 = vrot.slane %v1981, 4
    %v1999 = vsel %vm1950, 0.0, %v1998
    %v2000 = vrot.slane %v1985, 4
    %v2001 = vsel %vm1950, 0.0, %v2000
    %v2002 = vrot.slane %v1993, 4
    %v2003 = vsel %vm1950, 0.0, %v2002
    %v2004 = vrot.slane %v1997, 4
    %v2005 = vsel %vm1950, 0.0, %v2004
    %v2006 = vrot.slane %v1927, 4
    %v2007 = vsel %vm1950, %v2006, %v1889
    %v2008 = vrot.slane %v1889, 4
    %v2009 = vsel %vm1950, %v1927, %v2008
    %v2011 = vunpack.c.l.s4 1983009808
    %v2012 = vunpack.c.0.s8 %v2011
    %v2013 = vperm.slane %v2007, %v2012
    %v2015 = vunpack.c.l.s4 1983009808
    %v2016 = vunpack.c.0.s8 %v2015
    %v2017 = vperm.slane %v2009, %v2016
    %v2018 = vrot.slane %v1946, 4
    %v2019 = vsel %vm1950, %v2018, %v1908
    %v2020 = vrot.slane %v1908, 4
    %v2021 = vsel %vm1950, %v1946, %v2020
    %v2023 = vunpack.c.l.s4 1983009808
    %v2024 = vunpack.c.0.s8 %v2023
    %v2025 = vperm.slane %v2019, %v2024
    %v2027 = vunpack.c.l.s4 1983009808
    %v2028 = vunpack.c.0.s8 %v2027
    %v2029 = vperm.slane %v2021, %v2028
    %v2030 = vrot.slane %v2025, 4
    %v2031 = vsel %vm1950, %v2030, %v2013
    %v2032 = vrot.slane %v2013, 4
    %v2033 = vsel %vm1950, %v2025, %v2032
    %v2035 = vunpack.c.l.s4 1934713408
    %v2036 = vunpack.c.0.s8 %v2035
    %v2037 = vperm.slane %v2031, %v2036
    %v2039 = vunpack.c.l.s4 1934713408
    %v2040 = vunpack.c.0.s8 %v2039
    %v2041 = vperm.slane %v2033, %v2040
    %v2042 = vrot.slane %v2029, 4
    %v2043 = vsel %vm1950, %v2042, %v2017
    %v2044 = vrot.slane %v2017, 4
    %v2045 = vsel %vm1950, %v2029, %v2044
    %v2047 = vunpack.c.l.s4 1934713408
    %v2048 = vunpack.c.0.s8 %v2047
    %v2049 = vperm.slane %v2043, %v2048
    %v2051 = vunpack.c.l.s4 1934713408
    %v2052 = vunpack.c.0.s8 %v2051
    %v2053 = vperm.slane %v2045, %v2052
    %v2054 = vrot.slane %v2037, 4
    %v2055 = vsel %vm1950, 0.0, %v2054
    %v2056 = vrot.slane %v2041, 4
    %v2057 = vsel %vm1950, 0.0, %v2056
    %v2058 = vrot.slane %v2049, 4
    %v2059 = vsel %vm1950, 0.0, %v2058
    %v2060 = vrot.slane %v2053, 4
    %v2061 = vsel %vm1950, 0.0, %v2060
    %v2062 = vsel %vm1950, %v2000, %v1981
    %v2064 = vunpack.c.l.s4 1983009808
    %v2065 = vunpack.c.0.s8 %v2064
    %v2066 = vperm.slane %v2062, %v2065
    %v2067 = vrot.slane %v2001, 4
    %v2068 = vsel %vm1950, %v2067, %v1999
    %v2070 = vunpack.c.l.s4 1983009808
    %v2071 = vunpack.c.0.s8 %v2070
    %v2072 = vperm.slane %v2068, %v2071
    %v2073 = vsel %vm1950, %v2004, %v1993
    %v2075 = vunpack.c.l.s4 1983009808
    %v2076 = vunpack.c.0.s8 %v2075
    %v2077 = vperm.slane %v2073, %v2076
    %v2078 = vrot.slane %v2005, 4
    %v2079 = vsel %vm1950, %v2078, %v2003
    %v2081 = vunpack.c.l.s4 1983009808
    %v2082 = vunpack.c.0.s8 %v2081
    %v2083 = vperm.slane %v2079, %v2082
    %v2084 = vrot.slane %v2072, 4
    %v2085 = vsel %vm1950, %v2084, %v2066
    %v2086 = vrot.slane %v2066, 4
    %v2087 = vsel %vm1950, %v2072, %v2086
    %v2089 = vunpack.c.l.s4 1934713408
    %v2090 = vunpack.c.0.s8 %v2089
    %v2091 = vperm.slane %v2085, %v2090
    %v2093 = vunpack.c.l.s4 1934713408
    %v2094 = vunpack.c.0.s8 %v2093
    %v2095 = vperm.slane %v2087, %v2094
    %v2096 = vrot.slane %v2083, 4
    %v2097 = vsel %vm1950, %v2096, %v2077
    %v2098 = vrot.slane %v2077, 4
    %v2099 = vsel %vm1950, %v2083, %v2098
    %v2101 = vunpack.c.l.s4 1934713408
    %v2102 = vunpack.c.0.s8 %v2101
    %v2103 = vperm.slane %v2097, %v2102
    %v2105 = vunpack.c.l.s4 1934713408
    %v2106 = vunpack.c.0.s8 %v2105
    %v2107 = vperm.slane %v2099, %v2106
    %v2108 = vrot.slane %v2103, 4
    %v2109 = vsel %vm1950, %v2108, %v2091
    %v2110 = vrot.slane %v2091, 4
    %v2111 = vsel %vm1950, %v2103, %v2110
    %v2112 = vrot.slane %v2107, 4
    %v2113 = vsel %vm1950, %v2112, %v2095
    %v2114 = vrot.slane %v2095, 4
    %v2115 = vsel %vm1950, %v2107, %v2114
    %v2116 = vsel %vm1950, %v2056, %v2037
    %v2118 = vunpack.c.l.s4 1983009808
    %v2119 = vunpack.c.0.s8 %v2118
    %v2120 = vperm.slane %v2116, %v2119
    %v2121 = vrot.slane %v2057, 4
    %v2122 = vsel %vm1950, %v2121, %v2055
    %v2124 = vunpack.c.l.s4 1983009808
    %v2125 = vunpack.c.0.s8 %v2124
    %v2126 = vperm.slane %v2122, %v2125
    %v2127 = vsel %vm1950, %v2060, %v2049
    %v2129 = vunpack.c.l.s4 1983009808
    %v2130 = vunpack.c.0.s8 %v2129
    %v2131 = vperm.slane %v2127, %v2130
    %v2132 = vrot.slane %v2061, 4
    %v2133 = vsel %vm1950, %v2132, %v2059
    %v2135 = vunpack.c.l.s4 1983009808
    %v2136 = vunpack.c.0.s8 %v2135
    %v2137 = vperm.slane %v2133, %v2136
    %v2138 = vrot.slane %v2126, 4
    %v2139 = vsel %vm1950, %v2138, %v2120
    %v2140 = vrot.slane %v2120, 4
    %v2141 = vsel %vm1950, %v2126, %v2140
    %v2143 = vunpack.c.l.s4 1934713408
    %v2144 = vunpack.c.0.s8 %v2143
    %v2145 = vperm.slane %v2139, %v2144
    %v2147 = vunpack.c.l.s4 1934713408
    %v2148 = vunpack.c.0.s8 %v2147
    %v2149 = vperm.slane %v2141, %v2148
    %v2150 = vrot.slane %v2137, 4
    %v2151 = vsel %vm1950, %v2150, %v2131
    %v2152 = vrot.slane %v2131, 4
    %v2153 = vsel %vm1950, %v2137, %v2152
    %v2155 = vunpack.c.l.s4 1934713408
    %v2156 = vunpack.c.0.s8 %v2155
    %v2157 = vperm.slane %v2151, %v2156
    %v2159 = vunpack.c.l.s4 1934713408
    %v2160 = vunpack.c.0.s8 %v2159
    %v2161 = vperm.slane %v2153, %v2160
    %v2162 = vrot.slane %v2157, 4
    %v2163 = vsel %vm1950, %v2162, %v2145
    %v2164 = vrot.slane %v2145, 4
    %v2165 = vsel %vm1950, %v2157, %v2164
    %v2166 = vrot.slane %v2161, 4
    %v2167 = vsel %vm1950, %v2166, %v2149
    %v2168 = vrot.slane %v2149, 4
    %v2169 = vsel %vm1950, %v2161, %v2168
    %v2170 = vpack.c.bf16 %v2163, %v2109
    %v2171 = vpack.c.bf16 %v2165, %v2111
    %v2172 = vpack.c.bf16 %v2167, %v2113
    %v2173 = vpack.c.bf16 %v2169, %v2115
    %v2174 = vld [vmem:[#allocation10] sm:$0xf]
    %v2175 = vld [vmem:[#allocation10 + $0x4] sm:$0xf]
    %v2176 = vld [vmem:[#allocation10 + $0x8] sm:$0xf]
    %v2177 = vld [vmem:[#allocation10 + $0xc] sm:$0xf]
    %v2178 = vld [vmem:[#allocation10 + $0x10] sm:$0xf]
    %v2179 = vld [vmem:[#allocation10 + $0x14] sm:$0xf]
    %v2180 = vld [vmem:[#allocation10 + $0x18] sm:$0xf]
    %v2181 = vld [vmem:[#allocation10 + $0x1c] sm:$0xf]
    %v2182 = vld [vmem:[#allocation10 + $0x20] sm:$0xf]
    %v2183 = vld [vmem:[#allocation10 + $0x24] sm:$0xf]
    %v2184 = vld [vmem:[#allocation10 + $0x28] sm:$0xf]
    %v2185 = vld [vmem:[#allocation10 + $0x2c] sm:$0xf]
    %v2186 = vld [vmem:[#allocation10 + $0x30] sm:$0xf]
    %v2187 = vld [vmem:[#allocation10 + $0x34] sm:$0xf]
    %v2188 = vld [vmem:[#allocation10 + $0x38] sm:$0xf]
    %v2189 = vld [vmem:[#allocation10 + $0x3c] sm:$0xf]
    %v2190 = vld [vmem:[#allocation10 + $0x40] sm:$0xf]
    %v2191 = vld [vmem:[#allocation10 + $0x44] sm:$0xf]
    %v2192 = vld [vmem:[#allocation10 + $0x48] sm:$0xf]
    %v2193 = vld [vmem:[#allocation10 + $0x4c] sm:$0xf]
    %v2194 = vld [vmem:[#allocation10 + $0x50] sm:$0xf]
    %v2195 = vld [vmem:[#allocation10 + $0x54] sm:$0xf]
    %v2196 = vld [vmem:[#allocation10 + $0x58] sm:$0xf]
    %v2197 = vld [vmem:[#allocation10 + $0x5c] sm:$0xf]
    %v2198 = vld [vmem:[#allocation10 + $0x60] sm:$0xf]
    %v2199 = vld [vmem:[#allocation10 + $0x64] sm:$0xf]
    %v2200 = vld [vmem:[#allocation10 + $0x68] sm:$0xf]
    %v2201 = vld [vmem:[#allocation10 + $0x6c] sm:$0xf]
    %v2202 = vld [vmem:[#allocation10 + $0x70] sm:$0xf]
    %v2203 = vld [vmem:[#allocation10 + $0x74] sm:$0xf]
    %v2204 = vld [vmem:[#allocation10 + $0x78] sm:$0xf]
    %v2205 = vld [vmem:[#allocation10 + $0x7c] sm:$0xf]
    %v2206 = vld [vmem:[#allocation10 + $0x80] sm:$0xf]
    %v2207 = vld [vmem:[#allocation10 + $0x84] sm:$0xf]
    %v2208 = vld [vmem:[#allocation10 + $0x88] sm:$0xf]
    %v2209 = vld [vmem:[#allocation10 + $0x8c] sm:$0xf]
    %v2210 = vld [vmem:[#allocation10 + $0x90] sm:$0xf]
    %v2211 = vld [vmem:[#allocation10 + $0x94] sm:$0xf]
    %v2212 = vld [vmem:[#allocation10 + $0x98] sm:$0xf]
    %v2213 = vld [vmem:[#allocation10 + $0x9c] sm:$0xf]
    %v2214 = vld [vmem:[#allocation10 + $0xa0] sm:$0xf]
    %v2215 = vld [vmem:[#allocation10 + $0xa4] sm:$0xf]
    %v2216 = vld [vmem:[#allocation10 + $0xa8] sm:$0xf]
    %v2217 = vld [vmem:[#allocation10 + $0xac] sm:$0xf]
    %v2218 = vld [vmem:[#allocation10 + $0xb0] sm:$0xf]
    %v2219 = vld [vmem:[#allocation10 + $0xb4] sm:$0xf]
    %v2220 = vld [vmem:[#allocation10 + $0xb8] sm:$0xf]
    %v2221 = vld [vmem:[#allocation10 + $0xbc] sm:$0xf]
    %v2222 = vld [vmem:[#allocation10 + $0xc0] sm:$0xf]
    %v2223 = vld [vmem:[#allocation10 + $0xc4] sm:$0xf]
    %v2224 = vld [vmem:[#allocation10 + $0xc8] sm:$0xf]
    %v2225 = vld [vmem:[#allocation10 + $0xcc] sm:$0xf]
    %v2226 = vld [vmem:[#allocation10 + $0xd0] sm:$0xf]
    %v2227 = vld [vmem:[#allocation10 + $0xd4] sm:$0xf]
    %v2228 = vld [vmem:[#allocation10 + $0xd8] sm:$0xf]
    %v2229 = vld [vmem:[#allocation10 + $0xdc] sm:$0xf]
    %v2230 = vld [vmem:[#allocation10 + $0xe0] sm:$0xf]
    %v2231 = vld [vmem:[#allocation10 + $0xe4] sm:$0xf]
    %v2232 = vld [vmem:[#allocation10 + $0xe8] sm:$0xf]
    %v2233 = vld [vmem:[#allocation10 + $0xec] sm:$0xf]
    %v2234 = vld [vmem:[#allocation10 + $0xf0] sm:$0xf]
    %v2235 = vld [vmem:[#allocation10 + $0xf4] sm:$0xf]
    %v2236 = vld [vmem:[#allocation10 + $0xf8] sm:$0xf]
    %v2237 = vld [vmem:[#allocation10 + $0xfc] sm:$0xf]
    %v2238 = vld [vmem:[%s6] sm:$0x1]
    %v2240 = vperm.slane %v2238, 0
    %v2306 = vunpack.c.l.b16 %v2174
    %v2307 = vunpack.c.l.b16 %v2175
    %v2308 = vunpack.c.l.b16 %v2176
    %v2309 = vunpack.c.l.b16 %v2177
    %v2310 = vunpack.c.l.b16 %v2178
    %v2311 = vunpack.c.l.b16 %v2179
    %v2312 = vunpack.c.l.b16 %v2180
    %v2313 = vunpack.c.l.b16 %v2181
    %v2314 = vunpack.c.l.b16 %v2182
    %v2315 = vunpack.c.l.b16 %v2183
    %v2316 = vunpack.c.l.b16 %v2184
    %v2317 = vunpack.c.l.b16 %v2185
    %v2318 = vunpack.c.l.b16 %v2186
    %v2319 = vunpack.c.l.b16 %v2187
    %v2320 = vunpack.c.l.b16 %v2188
    %v2321 = vunpack.c.l.b16 %v2189
    %v2322 = vunpack.c.l.b16 %v2190
    %v2323 = vunpack.c.l.b16 %v2191
    %v2324 = vunpack.c.l.b16 %v2192
    %v2325 = vunpack.c.l.b16 %v2193
    %v2326 = vunpack.c.l.b16 %v2194
    %v2327 = vunpack.c.l.b16 %v2195
    %v2328 = vunpack.c.l.b16 %v2196
    %v2329 = vunpack.c.l.b16 %v2197
    %v2330 = vunpack.c.l.b16 %v2198
    %v2331 = vunpack.c.l.b16 %v2199
    %v2332 = vunpack.c.l.b16 %v2200
    %v2333 = vunpack.c.l.b16 %v2201
    %v2334 = vunpack.c.l.b16 %v2202
    %v2335 = vunpack.c.l.b16 %v2203
    %v2336 = vunpack.c.l.b16 %v2204
    %v2337 = vunpack.c.l.b16 %v2205
    %v2338 = vunpack.c.l.b16 %v2206
    %v2339 = vunpack.c.l.b16 %v2207
    %v2340 = vunpack.c.l.b16 %v2208
    %v2341 = vunpack.c.l.b16 %v2209
    %v2342 = vunpack.c.l.b16 %v2210
    %v2343 = vunpack.c.l.b16 %v2211
    %v2344 = vunpack.c.l.b16 %v2212
    %v2345 = vunpack.c.l.b16 %v2213
    %v2346 = vunpack.c.l.b16 %v2214
    %v2347 = vunpack.c.l.b16 %v2215
    %v2348 = vunpack.c.l.b16 %v2216
    %v2349 = vunpack.c.l.b16 %v2217
    %v2350 = vunpack.c.l.b16 %v2218
    %v2351 = vunpack.c.l.b16 %v2219
    %v2352 = vunpack.c.l.b16 %v2220
    %v2353 = vunpack.c.l.b16 %v2221
    %v2354 = vunpack.c.l.b16 %v2222
    %v2355 = vunpack.c.l.b16 %v2223
    %v2356 = vunpack.c.l.b16 %v2224
    %v2357 = vunpack.c.l.b16 %v2225
    %v2358 = vunpack.c.l.b16 %v2226
    %v2359 = vunpack.c.l.b16 %v2227
    %v2360 = vunpack.c.l.b16 %v2228
    %v2361 = vunpack.c.l.b16 %v2229
    %v2362 = vunpack.c.l.b16 %v2230
    %v2363 = vunpack.c.l.b16 %v2231
    %v2364 = vunpack.c.l.b16 %v2232
    %v2365 = vunpack.c.l.b16 %v2233
    %v2366 = vunpack.c.l.b16 %v2234
    %v2367 = vunpack.c.l.b16 %v2235
    %v2368 = vunpack.c.l.b16 %v2236
    %v2369 = vunpack.c.l.b16 %v2237
    %v2370 = vpack.c.b16 %v2307, %v2306
    %v2371 = vpack.c.b16 %v2309, %v2308
    %v2372 = vpack.c.b16 %v2311, %v2310
    %v2373 = vpack.c.b16 %v2313, %v2312
    %v2374 = vpack.c.b16 %v2315, %v2314
    %v2375 = vpack.c.b16 %v2317, %v2316
    %v2376 = vpack.c.b16 %v2319, %v2318
    %v2377 = vpack.c.b16 %v2321, %v2320
    %v2378 = vpack.c.b16 %v2323, %v2322
    %v2379 = vpack.c.b16 %v2325, %v2324
    %v2380 = vpack.c.b16 %v2327, %v2326
    %v2381 = vpack.c.b16 %v2329, %v2328
    %v2382 = vpack.c.b16 %v2331, %v2330
    %v2383 = vpack.c.b16 %v2333, %v2332
    %v2384 = vpack.c.b16 %v2335, %v2334
    %v2385 = vpack.c.b16 %v2337, %v2336
    %v2386 = vpack.c.b16 %v2339, %v2338
    %v2387 = vpack.c.b16 %v2341, %v2340
    %v2388 = vpack.c.b16 %v2343, %v2342
    %v2389 = vpack.c.b16 %v2345, %v2344
    %v2390 = vpack.c.b16 %v2347, %v2346
    %v2391 = vpack.c.b16 %v2349, %v2348
    %v2392 = vpack.c.b16 %v2351, %v2350
    %v2393 = vpack.c.b16 %v2353, %v2352
    %v2394 = vpack.c.b16 %v2355, %v2354
    %v2395 = vpack.c.b16 %v2357, %v2356
    %v2396 = vpack.c.b16 %v2359, %v2358
    %v2397 = vpack.c.b16 %v2361, %v2360
    %v2398 = vpack.c.b16 %v2363, %v2362
    %v2399 = vpack.c.b16 %v2365, %v2364
    %v2400 = vpack.c.b16 %v2367, %v2366
    %v2401 = vpack.c.b16 %v2369, %v2368
    %2434 = vmatpush.bf16.msra.mxu0 %v2377
    %2435 = vmatpush.bf16.msra.mxu0 %v2376
    %2436 = vmatpush.bf16.msra.mxu0 %v2375
    %2437 = vmatpush.bf16.msra.mxu0 %v2374
    %2438 = vmatpush.bf16.msra.mxu0 %v2373
    %2439 = vmatpush.bf16.msra.mxu0 %v2372
    %2440 = vmatpush.bf16.msra.mxu0 %v2371
    %2441 = vmatpush.bf16.msra.mxu0 %v2370
    %2442 = vmatmul.bf16.gmra.mxu0 %v2170
    %v2443 = vpop.f32.mrf.mxu0
    %v2444 = vadd.f32 %v2240, %v2443
    %v2445 = vpop.f32.mrf.mxu0
    %v2446 = vadd.f32 %v2240, %v2445
    %2447 = vdwg.mxu0
    %2448 = vmatpush.bf16.msra.mxu0 %v2385
    %2449 = vmatpush.bf16.msra.mxu0 %v2384
    %2450 = vmatpush.bf16.msra.mxu0 %v2383
    %2451 = vmatpush.bf16.msra.mxu0 %v2382
    %2452 = vmatpush.bf16.msra.mxu0 %v2381
    %2453 = vmatpush.bf16.msra.mxu0 %v2380
    %2454 = vmatpush.bf16.msra.mxu0 %v2379
    %2455 = vmatpush.bf16.msra.mxu0 %v2378
    %2456 = vmatmul.bf16.gmra.mxu0 %v2171
    %v2457 = vpop.f32.mrf.mxu0
    %v2458 = vadd.f32 %v2444, %v2457
    %v2459 = vpop.f32.mrf.mxu0
    %v2460 = vadd.f32 %v2446, %v2459
    %2461 = vdwg.mxu0
    %2462 = vmatpush.bf16.msra.mxu0 %v2393
    %2463 = vmatpush.bf16.msra.mxu0 %v2392
    %2464 = vmatpush.bf16.msra.mxu0 %v2391
    %2465 = vmatpush.bf16.msra.mxu0 %v2390
    %2466 = vmatpush.bf16.msra.mxu0 %v2389
    %2467 = vmatpush.bf16.msra.mxu0 %v2388
    %2468 = vmatpush.bf16.msra.mxu0 %v2387
    %2469 = vmatpush.bf16.msra.mxu0 %v2386
    %2470 = vmatmul.bf16.gmra.mxu0 %v2172
    %v2471 = vpop.f32.mrf.mxu0
    %v2472 = vadd.f32 %v2458, %v2471
    %v2473 = vpop.f32.mrf.mxu0
    %v2474 = vadd.f32 %v2460, %v2473
    %2475 = vdwg.mxu0
    %2476 = vmatpush.bf16.msra.mxu0 %v2401
    %2477 = vmatpush.bf16.msra.mxu0 %v2400
    %2478 = vmatpush.bf16.msra.mxu0 %v2399
    %2479 = vmatpush.bf16.msra.mxu0 %v2398
    %2480 = vmatpush.bf16.msra.mxu0 %v2397
    %2481 = vmatpush.bf16.msra.mxu0 %v2396
    %2482 = vmatpush.bf16.msra.mxu0 %v2395
    %2483 = vmatpush.bf16.msra.mxu0 %v2394
    %2484 = vmatmul.bf16.gmra.mxu0 %v2173
    %v2485 = vpop.f32.mrf.mxu0
    %v2486 = vadd.f32 %v2472, %v2485
    %v2487 = vpop.f32.mrf.mxu0
    %v2488 = vadd.f32 %v2474, %v2487
    %2489 = vdwg.mxu0
    %v2490 = vadd.f32 %v151, %v2486
    %v2491 = vadd.f32 %v152, %v2488
    %v2492 = vld [vmem:[%s7] sm:$0x1]
    %v2493 = vld [vmem:[%s8] sm:$0x1]
    %2494 = vadd.xlane.f32.xlu0 %v2490
    %v2495 = vpop.xlane.xlu0 %2494
    %2496 = vadd.xlane.f32.xlu0 %v2491
    %v2497 = vpop.xlane.xlu0 %2496
    %v2498 = vmul.f32 %v2495, 0.03125
    %v2499 = vmul.f32 %v2497, 0.03125
    %v2500 = vmul.f32 %v2490, %v2490
    %v2501 = vmul.f32 %v2491, %v2491
    %2502 = vadd.xlane.f32.xlu0 %v2500
    %v2503 = vpop.xlane.xlu0 %2502
    %2504 = vadd.xlane.f32.xlu0 %v2501
    %v2505 = vpop.xlane.xlu0 %2504
    %v2506 = vmul.f32 %v2503, 0.03125
    %v2507 = vmul.f32 %v2505, 0.03125
    %v2508 = vmul.f32 %v2498, %v2498
    %v2509 = vmul.f32 %v2499, %v2499
    %v2510 = vsub.f32 %v2506, %v2508
    %v2511 = vsub.f32 %v2507, %v2509
    %v2512 = vsub.f32 %v2490, %v2498
    %v2513 = vsub.f32 %v2491, %v2499
    %v2514 = vadd.f32 %v2510, 1e-05
    %v2515 = vadd.f32 %v2511, 1e-05
    %v2516 = vrsqrt.pop %v2514
    %v2517 = vmul.f32 %v2516, %v2514
    %v2518 = vmul.f32 %v2517, %v2516
    %v2519 = vmul.f32 0.5, %v2518
    %v2520 = vsub.f32 1.5, %v2519
    %v2521 = vmul.f32 %v2516, %v2520
    %vm2522 = vweird.f32 %v2514
    %vm2523 = vweird.f32 %v2516
    %vm2524 = vmor %vm2522, %vm2523
    %v2525 = vsel %vm2524, %v2516, %v2521
    %v2526 = vrsqrt.pop %v2515
    %v2527 = vmul.f32 %v2526, %v2515
    %v2528 = vmul.f32 %v2527, %v2526
    %v2529 = vmul.f32 0.5, %v2528
    %v2530 = vsub.f32 1.5, %v2529
    %v2531 = vmul.f32 %v2526, %v2530
    %vm2532 = vweird.f32 %v2515
    %vm2533 = vweird.f32 %v2526
    %vm2534 = vmor %vm2532, %vm2533
    %v2535 = vsel %vm2534, %v2526, %v2531
    %v2536 = vmul.f32 %v2512, %v2525
    %v2537 = vmul.f32 %v2513, %v2535
    %v2539 = vperm.slane %v2492, 0
    %v2541 = vmul.f32 %v2536, %v2539
    %v2542 = vmul.f32 %v2537, %v2539
    %v2544 = vperm.slane %v2493, 0
    %v2546 = vadd.f32 %v2541, %v2544
    %v2547 = vadd.f32 %v2542, %v2544
    %v2548 = vpack.c.bf16 %v2547, %v2546
    %v2549 = vld [vmem:[#allocation11] sm:$0xf]
    %v2550 = vld [vmem:[#allocation11 + $0x4] sm:$0xf]
    %v2551 = vld [vmem:[#allocation11 + $0x8] sm:$0xf]
    %v2552 = vld [vmem:[#allocation11 + $0xc] sm:$0xf]
    %v2553 = vld [vmem:[#allocation11 + $0x10] sm:$0xf]
    %v2554 = vld [vmem:[#allocation11 + $0x14] sm:$0xf]
    %v2555 = vld [vmem:[#allocation11 + $0x18] sm:$0xf]
    %v2556 = vld [vmem:[#allocation11 + $0x1c] sm:$0xf]
    %v2557 = vld [vmem:[#allocation11 + $0x20] sm:$0xf]
    %v2558 = vld [vmem:[#allocation11 + $0x24] sm:$0xf]
    %v2559 = vld [vmem:[#allocation11 + $0x28] sm:$0xf]
    %v2560 = vld [vmem:[#allocation11 + $0x2c] sm:$0xf]
    %v2561 = vld [vmem:[#allocation11 + $0x30] sm:$0xf]
    %v2562 = vld [vmem:[#allocation11 + $0x34] sm:$0xf]
    %v2563 = vld [vmem:[#allocation11 + $0x38] sm:$0xf]
    %v2564 = vld [vmem:[#allocation11 + $0x3c] sm:$0xf]
    %v2565 = vld [vmem:[%s10] sm:$0x1]
    %v2567 = vperm.slane %v2565, 0
    %v2585 = vunpack.c.l.b16 %v2549
    %v2586 = vunpack.c.l.b16 %v2550
    %v2587 = vunpack.c.l.b16 %v2551
    %v2588 = vunpack.c.l.b16 %v2552
    %v2589 = vunpack.c.l.b16 %v2553
    %v2590 = vunpack.c.l.b16 %v2554
    %v2591 = vunpack.c.l.b16 %v2555
    %v2592 = vunpack.c.l.b16 %v2556
    %v2593 = vunpack.c.l.b16 %v2557
    %v2594 = vunpack.c.l.b16 %v2558
    %v2595 = vunpack.c.l.b16 %v2559
    %v2596 = vunpack.c.l.b16 %v2560
    %v2597 = vunpack.c.l.b16 %v2561
    %v2598 = vunpack.c.l.b16 %v2562
    %v2599 = vunpack.c.l.b16 %v2563
    %v2600 = vunpack.c.l.b16 %v2564
    %v2601 = vpack.c.b16 %v2586, %v2585
    %v2602 = vpack.c.b16 %v2588, %v2587
    %v2603 = vpack.c.b16 %v2590, %v2589
    %v2604 = vpack.c.b16 %v2592, %v2591
    %v2605 = vpack.c.b16 %v2594, %v2593
    %v2606 = vpack.c.b16 %v2596, %v2595
    %v2607 = vpack.c.b16 %v2598, %v2597
    %v2608 = vpack.c.b16 %v2600, %v2599
    %2617 = vmatpush.bf16.msra.mxu0 %v2608
    %2618 = vmatpush.bf16.msra.mxu0 %v2607
    %2619 = vmatpush.bf16.msra.mxu0 %v2606
    %2620 = vmatpush.bf16.msra.mxu0 %v2605
    %2621 = vmatpush.bf16.msra.mxu0 %v2604
    %2622 = vmatpush.bf16.msra.mxu0 %v2603
    %2623 = vmatpush.bf16.msra.mxu0 %v2602
    %2624 = vmatpush.bf16.msra.mxu0 %v2601
    %2625 = vmatmul.bf16.gmra.mxu0 %v2548
    %v2626 = vpop.f32.mrf.mxu0
    %v2627 = vadd.f32 %v2567, %v2626
    %v2628 = vpop.f32.mrf.mxu0
    %v2629 = vadd.f32 %v2567, %v2628
    %2630 = vdwg.mxu0
    %v2631 = vmax.f32 %v2627, 0.0
    %v2632 = vmax.f32 %v2629, 0.0
    %v2633 = vpack.c.bf16 %v2632, %v2631
    %v2634 = vld [vmem:[#allocation13] sm:$0xf]
    %v2635 = vld [vmem:[#allocation13 + $0x4] sm:$0xf]
    %v2636 = vld [vmem:[#allocation13 + $0x8] sm:$0xf]
    %v2637 = vld [vmem:[#allocation13 + $0xc] sm:$0xf]
    %v2638 = vld [vmem:[#allocation13 + $0x10] sm:$0xf]
    %v2639 = vld [vmem:[#allocation13 + $0x14] sm:$0xf]
    %v2640 = vld [vmem:[#allocation13 + $0x18] sm:$0xf]
    %v2641 = vld [vmem:[#allocation13 + $0x1c] sm:$0xf]
    %v2642 = vld [vmem:[#allocation13 + $0x20] sm:$0xf]
    %v2643 = vld [vmem:[#allocation13 + $0x24] sm:$0xf]
    %v2644 = vld [vmem:[#allocation13 + $0x28] sm:$0xf]
    %v2645 = vld [vmem:[#allocation13 + $0x2c] sm:$0xf]
    %v2646 = vld [vmem:[#allocation13 + $0x30] sm:$0xf]
    %v2647 = vld [vmem:[#allocation13 + $0x34] sm:$0xf]
    %v2648 = vld [vmem:[#allocation13 + $0x38] sm:$0xf]
    %v2649 = vld [vmem:[#allocation13 + $0x3c] sm:$0xf]
    %v2650 = vld [vmem:[%s12] sm:$0x1]
    %v2652 = vperm.slane %v2650, 0
    %v2670 = vunpack.c.l.b16 %v2634
    %v2671 = vunpack.c.l.b16 %v2635
    %v2672 = vunpack.c.l.b16 %v2636
    %v2673 = vunpack.c.l.b16 %v2637
    %v2674 = vunpack.c.l.b16 %v2638
    %v2675 = vunpack.c.l.b16 %v2639
    %v2676 = vunpack.c.l.b16 %v2640
    %v2677 = vunpack.c.l.b16 %v2641
    %v2678 = vunpack.c.l.b16 %v2642
    %v2679 = vunpack.c.l.b16 %v2643
    %v2680 = vunpack.c.l.b16 %v2644
    %v2681 = vunpack.c.l.b16 %v2645
    %v2682 = vunpack.c.l.b16 %v2646
    %v2683 = vunpack.c.l.b16 %v2647
    %v2684 = vunpack.c.l.b16 %v2648
    %v2685 = vunpack.c.l.b16 %v2649
    %v2686 = vpack.c.b16 %v2671, %v2670
    %v2687 = vpack.c.b16 %v2673, %v2672
    %v2688 = vpack.c.b16 %v2675, %v2674
    %v2689 = vpack.c.b16 %v2677, %v2676
    %v2690 = vpack.c.b16 %v2679, %v2678
    %v2691 = vpack.c.b16 %v2681, %v2680
    %v2692 = vpack.c.b16 %v2683, %v2682
    %v2693 = vpack.c.b16 %v2685, %v2684
    %2702 = vmatpush.bf16.msra.mxu0 %v2693
    %2703 = vmatpush.bf16.msra.mxu0 %v2692
    %2704 = vmatpush.bf16.msra.mxu0 %v2691
    %2705 = vmatpush.bf16.msra.mxu0 %v2690
    %2706 = vmatpush.bf16.msra.mxu0 %v2689
    %2707 = vmatpush.bf16.msra.mxu0 %v2688
    %2708 = vmatpush.bf16.msra.mxu0 %v2687
    %2709 = vmatpush.bf16.msra.mxu0 %v2686
    %2710 = vmatmul.bf16.gmra.mxu0 %v2633
    %v2711 = vpop.f32.mrf.mxu0
    %v2712 = vadd.f32 %v2652, %v2711
    %v2713 = vpop.f32.mrf.mxu0
    %v2714 = vadd.f32 %v2652, %v2713
    %2715 = vdwg.mxu0
    %v2716 = vadd.f32 %v2490, %v2712
    %v2717 = vadd.f32 %v2491, %v2714
    %2718 = vst [vmem:[#allocation14] sm:$0xff] %v2716
    %2719 = vst [vmem:[#allocation14 + $0x8] sm:$0xff] %v2717
    // Predicated region
    $region82: #{tpu_custom_call.1} parent=1 // pred_check
      _
    $region83: #{tpu_custom_call.1} parent=1 // pred_check_branch
      %2721 = sbr.rel (0) target = $region85
    $region84: #{tpu_custom_call.1} parent=1 // pred_region
      %2723 = vsyncadd [#allocation4], 0
      %s2724 = sshll.u32 [#allocation14], 4
      %s2725 = int_to_ptr.vmem [resolvable:$true] %s2724
      %s2726 = sshll.u32 %s13, 4
      %s2727 = int_to_ptr.hbm [resolvable:$true] %s2726
      %2732 = dma.vmem_to_hbm [thread:$0]  %s2725, 256, %s2727, [#allocation4], 128, 128, 8
    $region85: #{tpu_custom_call.1} parent=1 // pred_fallthru
      _
    // Predicated region
    $region86: #{tpu_custom_call.1} parent=1 // pred_check
      _
    $region87: #{tpu_custom_call.1} parent=1 // pred_check_branch
      %2734 = sbr.rel (0) target = $region89
    $region88: #{tpu_custom_call.1} parent=1 // pred_region
      %2736 = dma.done [#allocation4], 256
    $region89: #{tpu_custom_call.1} parent=1 // pred_fallthru
      _
    %2737 = vsyncpa [#allocation3], 1
    %2738 = vsyncpa [#allocation6], 1
    %2739 = vsyncpa [#allocation9], 1
    %2740 = vsyncpa [#allocation12], 1
    %2741 = vsyncpa [#allocation4], 1

</llo_original>
